<compile_context>
chip_gen: v5e
topology: v5e:2x2
jax: 0.10.0
libtpu: 0.0.40
codegen_flags: <defaults>
</compile_context>

<pallas_src>
import functools

import numpy as np

import jax
import jax.numpy as jnp
from jax.experimental import pallas as pl
from jax.experimental.pallas import tpu as pltpu

BN_EPS = 1e-5


# ------------------------------ Pallas kernel -------------------------------


def _ffm_kernel(x1_ref, x2_ref, w1_ref, b1_ref, w2_ref, b2_ref, mask_ref,
                o_ref, *, shifts, mask_in_bf16):
    # Blocks:
    #   x1_ref, x2_ref, o_ref : (1, C, L)   L = N_blk*H*W on the lane axis
    #   w1_ref, w2_ref        : (C, 9*C)    bf16, BN scale folded, col = k*C+cin
    #   b1_ref, b2_ref        : (C, 1)      f32  (folded BN bias)
    #   mask_ref              : (9, 1, L)   zero-padding border masks
    y = x1_ref[0] * x2_ref[0]                         # fused elementwise gate

    def conv3x3_bn_relu(act, w_ref, b_ref):
        # Stack the 9 shifted+masked taps along K into one (9*C, L) bf16 slab,
        # then a single (C, 9*C) @ (9*C, L) MXU matmul (K = 9*C fills the MXU;
        # accumulation of the 9 taps happens inside the MXU, not on the VPU).
        taps = []
        for k, shift in enumerate(shifts):
            t = act if shift == 0 else pltpu.roll(act, shift, axis=1)
            if shift == 0:
                t = t.astype(jnp.bfloat16)            # center tap: mask is all ones
            elif mask_in_bf16:
                t = t.astype(jnp.bfloat16) * mask_ref[k]   # v6e/v7x: bf16 VALU
            else:
                t = (t * mask_ref[k]).astype(jnp.bfloat16)  # v5e: f32 mul, then cast
            taps.append(t)
        slab = jnp.concatenate(taps, axis=0)                      # (9*C, L) bf16
        acc = jnp.dot(w_ref[...], slab, preferred_element_type=jnp.float32)
        return jnp.maximum(acc + b_ref[...], 0.0)                 # bias + ReLU

    h = conv3x3_bn_relu(y, w1_ref, b1_ref)            # stays in VMEM/vregs
    o_ref[0] = conv3x3_bn_relu(h, w2_ref, b2_ref).astype(o_ref.dtype)


# ------------------------- tap shift / mask helpers --------------------------


def _tap_shifts(H, W, L):
    # Tap (dy, dx) needs z[:, m] = y[:, m + s] with s = (dy-1)*W + (dx-1).
    # pltpu.roll matches jnp.roll: roll(y, r)[m] = y[(m - r) mod L] -> r = -s.
    # Any wrap across an image boundary (or the slab edge) lands on a position
    # the zero-padding mask zeroes anyway, so the modulus is the full lane
    # length L (batch concatenated on lanes).
    return tuple((-((dy - 1) * W + (dx - 1))) % L
                 for dy in range(3) for dx in range(3))


def _tap_masks(H, W, n_blk, dtype):
    # 1 where the tap reads a real pixel, 0 where it falls in the zero padding;
    # tiled n_blk times so it also zeroes cross-image wrapped reads.
    m = np.arange(H * W)
    h, w = m // W, m % W
    masks = []
    for dy in range(3):
        for dx in range(3):
            valid = ((h + dy - 1 >= 0) & (h + dy - 1 < H) &
                     (w + dx - 1 >= 0) & (w + dx - 1 < W))
            masks.append(np.tile(valid.astype(np.float32), n_blk))
    return jnp.asarray(np.stack(masks)[:, None, :], dtype=dtype)   # (9, 1, L)


# ------------------------------ forward wrapper ------------------------------


def ffm_forward(folded, x1_nchw, x2_nchw, *, images_per_block=None):
    N, C, H, W = x1_nchw.shape
    M = H * W

    kind = jax.devices()[0].device_kind.lower()
    # bf16 VALU exists on v6e / v7x -> mask the taps in packed bf16 there.
    mask_in_bf16 = ("v6" in kind) or ("v7" in kind)
    if images_per_block is None:
        # v7x has 2 TensorCores/chip: give each core its own batch block.  On
        # single-TC v5e/v6e one big block minimizes per-grid-step overhead and
        # widens the matmul N dimension to N*H*W.
        images_per_block = N // 2 if ("v7" in kind and N % 2 == 0) else N
    n_blk = max(1, min(images_per_block, N))
    assert N % n_blk == 0, (N, n_blk)
    n_blocks = N // n_blk
    L = n_blk * M

    mask_dtype = jnp.bfloat16 if mask_in_bf16 else jnp.float32
    masks = _tap_masks(H, W, n_blk, mask_dtype)
    shifts = _tap_shifts(H, W, L)

    def to_blocks(x):   # (N, C, H, W) -> (n_blocks, C, n_blk*M), batch on lanes
        return (x.reshape(n_blocks, n_blk, C, M)
                 .transpose(0, 2, 1, 3)
                 .reshape(n_blocks, C, L))

    x1 = to_blocks(x1_nchw)
    x2 = to_blocks(x2_nchw)

    out = pl.pallas_call(
        functools.partial(_ffm_kernel, shifts=shifts, mask_in_bf16=mask_in_bf16),
        out_shape=jax.ShapeDtypeStruct((n_blocks, C, L), x1_nchw.dtype),
        grid_spec=pltpu.PrefetchScalarGridSpec(
            num_scalar_prefetch=0,
            grid=(n_blocks,),
            in_specs=[
                pl.BlockSpec((1, C, L), lambda b: (b, 0, 0)),    # x1
                pl.BlockSpec((1, C, L), lambda b: (b, 0, 0)),    # x2
                pl.BlockSpec((C, 9 * C), lambda b: (0, 0)),      # w1 (folded, bf16)
                pl.BlockSpec((C, 1),     lambda b: (0, 0)),      # b1
                pl.BlockSpec((C, 9 * C), lambda b: (0, 0)),      # w2 (folded, bf16)
                pl.BlockSpec((C, 1),     lambda b: (0, 0)),      # b2
                pl.BlockSpec((9, 1, L),  lambda b: (0, 0, 0)),   # border masks
            ],
            out_specs=pl.BlockSpec((1, C, L), lambda b: (b, 0, 0)),
        ),
        compiler_params=pltpu.CompilerParams(
            dimension_semantics=("parallel",),
            vmem_limit_bytes=32 * 1024 * 1024,   # within v7x's 64 MiB physical VMEM
        ),
    )(x1, x2, folded['w1'], folded['b1'], folded['w2'], folded['b2'], masks)

    return (out.reshape(n_blocks, C, n_blk, M)
               .transpose(0, 2, 1, 3)
               .reshape(N, C, H, W))


# ----------------------------- parameter handling ----------------------------


def init_ffm_params(key, channel):
    # Conv2d kaiming_normal_ (fan_in, relu) like weight_init; synthetic BN stats.
    kw1, kw2, kb1, kb2 = jax.random.split(key, 4)
    std = float(np.sqrt(2.0 / (channel * 9)))

    def bn_params(k):
        k1, k2, k3, k4 = jax.random.split(k, 4)
        gamma = jax.random.uniform(k1, (channel,), jnp.float32, 0.8, 1.2)
        beta = 0.1 * jax.random.normal(k2, (channel,), jnp.float32)
        mean = 0.1 * jax.random.normal(k3, (channel,), jnp.float32)
        var = jax.random.uniform(k4, (channel,), jnp.float32, 0.8, 1.2)
        return gamma, beta, mean, var

    return {
        'w1': std * jax.random.normal(kw1, (channel, channel, 3, 3), jnp.float32),
        'w2': std * jax.random.normal(kw2, (channel, channel, 3, 3), jnp.float32),
        'bn1': bn_params(kb1),
        'bn2': bn_params(kb2),
    }


def fold_ffm_params(raw):
    # Fold BN scale into the conv weights and flatten to (C_out, 9*C_in) so the
    # kernel does ONE MXU matmul per conv with K = 9*C.  Column order matches
    # the kernel's tap slab: col = (dy*3 + dx)*C + c_in.
    def fold(w, bn):
        gamma, beta, mean, var = bn
        scale = gamma / jnp.sqrt(var + BN_EPS)
        bias = beta - mean * scale
        C = w.shape[0]
        wf = jnp.transpose(w, (0, 2, 3, 1)).reshape(C, 9 * C)    # (cout, k*C + cin)
        wf = (wf * scale[:, None]).astype(jnp.bfloat16)
        return wf, bias.reshape(C, 1).astype(jnp.float32)

    w1, b1 = fold(raw['w1'], raw['bn1'])
    w2, b2 = fold(raw['w2'], raw['bn2'])
    return {'w1': w1, 'b1': b1, 'w2': w2, 'b2': b2}


# -------------------------------- pure-JAX ref --------------------------------


def ffm_reference(raw, x1, x2):
    def layer(x, w, bn):
        gamma, beta, mean, var = bn
        out = jax.lax.conv_general_dilated(
            x, w, window_strides=(1, 1), padding=((1, 1), (1, 1)),
            dimension_numbers=('NCHW', 'OIHW', 'NCHW'))
        scale = (gamma / jnp.sqrt(var + BN_EPS)).reshape(1, -1, 1, 1)
        bias = (beta - mean * gamma / jnp.sqrt(var + BN_EPS)).reshape(1, -1, 1, 1)
        return jnp.maximum(out * scale + bias, 0.0)

    y = x1 * x2
    h = layer(y, raw['w1'], raw['bn1'])
    return layer(h, raw['w2'], raw['bn2'])


# ----------------------------------- main ------------------------------------

if __name__ == "__main__":
    key = jax.random.PRNGKey(0)
    k_p, k_x1, k_x2 = jax.random.split(key, 3)

    N, C, H, W = 2, 32, 16, 16
    raw = init_ffm_params(k_p, C)
    folded = fold_ffm_params(raw)

    x1 = jax.random.normal(k_x1, (N, C, H, W), jnp.float32)
    x2 = jax.random.normal(k_x2, (N, C, H, W), jnp.float32)

    fwd = jax.jit(ffm_forward)
    out = fwd(folded, x1, x2)
    out = jax.block_until_ready(out)

    assert out.shape == (N, C, H, W), out.shape

    # Correctness check against a pure-JAX reference (loose tolerance for the
    # bf16 MXU matmuls inside the kernel).
    ref = jax.block_until_ready(ffm_reference(raw, x1, x2))
    np.testing.assert_allclose(np.asarray(out), np.asarray(ref),
                               rtol=5e-2, atol=5e-2)

    print("KERNEL_OK")
</pallas_src>

<mosaic_0001>
module attributes {stable_mosaic.version = 11 : i64} {
  func.func @_ffm_kernel(%arg0: i32, %arg1: memref<1x32x512xf32, #tpu.memory_space<vmem>>, %arg2: memref<1x32x512xf32, #tpu.memory_space<vmem>>, %arg3: memref<32x288xbf16, #tpu.memory_space<vmem>>, %arg4: memref<32x1xf32, #tpu.memory_space<vmem>>, %arg5: memref<32x288xbf16, #tpu.memory_space<vmem>>, %arg6: memref<32x1xf32, #tpu.memory_space<vmem>>, %arg7: memref<9x1x512xf32, #tpu.memory_space<vmem>>, %arg8: memref<1x32x512xf32, #tpu.memory_space<vmem>>) attributes {dimension_semantics = [#tpu.dimension_semantics<parallel>], iteration_bounds = array<i64: 1>, scalar_prefetch = 0 : i64, scratch_operands = 0 : i64, tpu.core_type = #tpu.core_type<tc>, window_params = [{transform_indices = @transform_0, window_bounds = array<i64: 1, 32, 512>}, {transform_indices = @transform_1, window_bounds = array<i64: 1, 32, 512>}, {pipeline_mode = #tpu.pipeline_mode<synchronous>, transform_indices = @transform_2, window_bounds = array<i64: 32, 288>}, {pipeline_mode = #tpu.pipeline_mode<synchronous>, transform_indices = @transform_3, window_bounds = array<i64: 32, 1>}, {pipeline_mode = #tpu.pipeline_mode<synchronous>, transform_indices = @transform_4, window_bounds = array<i64: 32, 288>}, {pipeline_mode = #tpu.pipeline_mode<synchronous>, transform_indices = @transform_5, window_bounds = array<i64: 32, 1>}, {pipeline_mode = #tpu.pipeline_mode<synchronous>, transform_indices = @transform_6, window_bounds = array<i64: 9, 1, 512>}, {transform_indices = @transform_7, window_bounds = array<i64: 1, 32, 512>}]} {
    %c0 = arith.constant 0 : index
    %c0_0 = arith.constant 0 : index
    %c0_1 = arith.constant 0 : index
    %0 = vector.load %arg1[%c0, %c0_0, %c0_1] : memref<1x32x512xf32, #tpu.memory_space<vmem>>, vector<1x32x512xf32>
    %1 = vector.shape_cast %0 : vector<1x32x512xf32> to vector<32x512xf32>
    %c0_2 = arith.constant 0 : index
    %c0_3 = arith.constant 0 : index
    %c0_4 = arith.constant 0 : index
    %2 = vector.load %arg2[%c0_2, %c0_3, %c0_4] : memref<1x32x512xf32, #tpu.memory_space<vmem>>, vector<1x32x512xf32>
    %3 = vector.shape_cast %2 : vector<1x32x512xf32> to vector<32x512xf32>
    %4 = arith.mulf %1, %3 : vector<32x512xf32>
    %c17_i32 = arith.constant 17 : i32
    %5 = tpu.dynamic_rotate %4 by %c17_i32 dim 1 : vector<32x512xf32>, i32 -> vector<32x512xf32>
    %c0_5 = arith.constant 0 : index
    %c0_6 = arith.constant 0 : index
    %c0_7 = arith.constant 0 : index
    %6 = vector.load %arg7[%c0_5, %c0_6, %c0_7] : memref<9x1x512xf32, #tpu.memory_space<vmem>>, vector<1x1x512xf32>
    %7 = vector.shape_cast %6 : vector<1x1x512xf32> to vector<1x512xf32>
    %8 = vector.broadcast %7 : vector<1x512xf32> to vector<32x512xf32>
    %9 = arith.mulf %5, %8 : vector<32x512xf32>
    %10 = arith.truncf %9 : vector<32x512xf32> to vector<32x512xbf16>
    %c16_i32 = arith.constant 16 : i32
    %11 = tpu.dynamic_rotate %4 by %c16_i32 dim 1 : vector<32x512xf32>, i32 -> vector<32x512xf32>
    %c1 = arith.constant 1 : index
    %c0_8 = arith.constant 0 : index
    %c0_9 = arith.constant 0 : index
    %12 = vector.load %arg7[%c1, %c0_8, %c0_9] : memref<9x1x512xf32, #tpu.memory_space<vmem>>, vector<1x1x512xf32>
    %13 = vector.shape_cast %12 : vector<1x1x512xf32> to vector<1x512xf32>
    %14 = vector.broadcast %13 : vector<1x512xf32> to vector<32x512xf32>
    %15 = arith.mulf %11, %14 : vector<32x512xf32>
    %16 = arith.truncf %15 : vector<32x512xf32> to vector<32x512xbf16>
    %c15_i32 = arith.constant 15 : i32
    %17 = tpu.dynamic_rotate %4 by %c15_i32 dim 1 : vector<32x512xf32>, i32 -> vector<32x512xf32>
    %c2 = arith.constant 2 : index
    %c0_10 = arith.constant 0 : index
    %c0_11 = arith.constant 0 : index
    %18 = vector.load %arg7[%c2, %c0_10, %c0_11] : memref<9x1x512xf32, #tpu.memory_space<vmem>>, vector<1x1x512xf32>
    %19 = vector.shape_cast %18 : vector<1x1x512xf32> to vector<1x512xf32>
    %20 = vector.broadcast %19 : vector<1x512xf32> to vector<32x512xf32>
    %21 = arith.mulf %17, %20 : vector<32x512xf32>
    %22 = arith.truncf %21 : vector<32x512xf32> to vector<32x512xbf16>
    %c1_i32 = arith.constant 1 : i32
    %23 = tpu.dynamic_rotate %4 by %c1_i32 dim 1 : vector<32x512xf32>, i32 -> vector<32x512xf32>
    %c3 = arith.constant 3 : index
    %c0_12 = arith.constant 0 : index
    %c0_13 = arith.constant 0 : index
    %24 = vector.load %arg7[%c3, %c0_12, %c0_13] : memref<9x1x512xf32, #tpu.memory_space<vmem>>, vector<1x1x512xf32>
    %25 = vector.shape_cast %24 : vector<1x1x512xf32> to vector<1x512xf32>
    %26 = vector.broadcast %25 : vector<1x512xf32> to vector<32x512xf32>
    %27 = arith.mulf %23, %26 : vector<32x512xf32>
    %28 = arith.truncf %27 : vector<32x512xf32> to vector<32x512xbf16>
    %29 = arith.truncf %4 : vector<32x512xf32> to vector<32x512xbf16>
    %c511_i32 = arith.constant 511 : i32
    %30 = tpu.dynamic_rotate %4 by %c511_i32 dim 1 : vector<32x512xf32>, i32 -> vector<32x512xf32>
    %c5 = arith.constant 5 : index
    %c0_14 = arith.constant 0 : index
    %c0_15 = arith.constant 0 : index
    %31 = vector.load %arg7[%c5, %c0_14, %c0_15] : memref<9x1x512xf32, #tpu.memory_space<vmem>>, vector<1x1x512xf32>
    %32 = vector.shape_cast %31 : vector<1x1x512xf32> to vector<1x512xf32>
    %33 = vector.broadcast %32 : vector<1x512xf32> to vector<32x512xf32>
    %34 = arith.mulf %30, %33 : vector<32x512xf32>
    %35 = arith.truncf %34 : vector<32x512xf32> to vector<32x512xbf16>
    %c497_i32 = arith.constant 497 : i32
    %36 = tpu.dynamic_rotate %4 by %c497_i32 dim 1 : vector<32x512xf32>, i32 -> vector<32x512xf32>
    %c6 = arith.constant 6 : index
    %c0_16 = arith.constant 0 : index
    %c0_17 = arith.constant 0 : index
    %37 = vector.load %arg7[%c6, %c0_16, %c0_17] : memref<9x1x512xf32, #tpu.memory_space<vmem>>, vector<1x1x512xf32>
    %38 = vector.shape_cast %37 : vector<1x1x512xf32> to vector<1x512xf32>
    %39 = vector.broadcast %38 : vector<1x512xf32> to vector<32x512xf32>
    %40 = arith.mulf %36, %39 : vector<32x512xf32>
    %41 = arith.truncf %40 : vector<32x512xf32> to vector<32x512xbf16>
    %c496_i32 = arith.constant 496 : i32
    %42 = tpu.dynamic_rotate %4 by %c496_i32 dim 1 : vector<32x512xf32>, i32 -> vector<32x512xf32>
    %c7 = arith.constant 7 : index
    %c0_18 = arith.constant 0 : index
    %c0_19 = arith.constant 0 : index
    %43 = vector.load %arg7[%c7, %c0_18, %c0_19] : memref<9x1x512xf32, #tpu.memory_space<vmem>>, vector<1x1x512xf32>
    %44 = vector.shape_cast %43 : vector<1x1x512xf32> to vector<1x512xf32>
    %45 = vector.broadcast %44 : vector<1x512xf32> to vector<32x512xf32>
    %46 = arith.mulf %42, %45 : vector<32x512xf32>
    %47 = arith.truncf %46 : vector<32x512xf32> to vector<32x512xbf16>
    %c495_i32 = arith.constant 495 : i32
    %48 = tpu.dynamic_rotate %4 by %c495_i32 dim 1 : vector<32x512xf32>, i32 -> vector<32x512xf32>
    %c8 = arith.constant 8 : index
    %c0_20 = arith.constant 0 : index
    %c0_21 = arith.constant 0 : index
    %49 = vector.load %arg7[%c8, %c0_20, %c0_21] : memref<9x1x512xf32, #tpu.memory_space<vmem>>, vector<1x1x512xf32>
    %50 = vector.shape_cast %49 : vector<1x1x512xf32> to vector<1x512xf32>
    %51 = vector.broadcast %50 : vector<1x512xf32> to vector<32x512xf32>
    %52 = arith.mulf %48, %51 : vector<32x512xf32>
    %53 = arith.truncf %52 : vector<32x512xf32> to vector<32x512xbf16>
    %54 = tpu.concatenate %10, %16, %22, %28, %29, %35, %41, %47, %53 in 0 : vector<32x512xbf16>, vector<32x512xbf16>, vector<32x512xbf16>, vector<32x512xbf16>, vector<32x512xbf16>, vector<32x512xbf16>, vector<32x512xbf16>, vector<32x512xbf16>, vector<32x512xbf16> -> vector<288x512xbf16>
    %c0_22 = arith.constant 0 : index
    %c0_23 = arith.constant 0 : index
    %55 = vector.load %arg3[%c0_22, %c0_23] : memref<32x288xbf16, #tpu.memory_space<vmem>>, vector<32x288xbf16>
    %cst = arith.constant dense<0.000000e+00> : vector<32x512xf32>
    %56 = tpu.matmul %55, %54, %cst {dimension_numbers = #tpu.dot_dimension_numbers<[1], [0], [0], [1], [0, 0, 1, 1], [], []>} : vector<32x288xbf16>, vector<288x512xbf16>, vector<32x512xf32> -> vector<32x512xf32>
    %c0_24 = arith.constant 0 : index
    %c0_25 = arith.constant 0 : index
    %57 = vector.load %arg4[%c0_24, %c0_25] : memref<32x1xf32, #tpu.memory_space<vmem>>, vector<32x1xf32>
    %58 = vector.broadcast %57 : vector<32x1xf32> to vector<32x512xf32>
    %59 = arith.addf %56, %58 : vector<32x512xf32>
    %cst_26 = arith.constant 0.000000e+00 : f32
    %60 = vector.broadcast %cst_26 : f32 to vector<32x512xf32>
    %61 = arith.maximumf %59, %60 : vector<32x512xf32>
    %c17_i32_27 = arith.constant 17 : i32
    %62 = tpu.dynamic_rotate %61 by %c17_i32_27 dim 1 : vector<32x512xf32>, i32 -> vector<32x512xf32>
    %c0_28 = arith.constant 0 : index
    %c0_29 = arith.constant 0 : index
    %c0_30 = arith.constant 0 : index
    %63 = vector.load %arg7[%c0_28, %c0_29, %c0_30] : memref<9x1x512xf32, #tpu.memory_space<vmem>>, vector<1x1x512xf32>
    %64 = vector.shape_cast %63 : vector<1x1x512xf32> to vector<1x512xf32>
    %65 = vector.broadcast %64 : vector<1x512xf32> to vector<32x512xf32>
    %66 = arith.mulf %62, %65 : vector<32x512xf32>
    %67 = arith.truncf %66 : vector<32x512xf32> to vector<32x512xbf16>
    %c16_i32_31 = arith.constant 16 : i32
    %68 = tpu.dynamic_rotate %61 by %c16_i32_31 dim 1 : vector<32x512xf32>, i32 -> vector<32x512xf32>
    %c1_32 = arith.constant 1 : index
    %c0_33 = arith.constant 0 : index
    %c0_34 = arith.constant 0 : index
    %69 = vector.load %arg7[%c1_32, %c0_33, %c0_34] : memref<9x1x512xf32, #tpu.memory_space<vmem>>, vector<1x1x512xf32>
    %70 = vector.shape_cast %69 : vector<1x1x512xf32> to vector<1x512xf32>
    %71 = vector.broadcast %70 : vector<1x512xf32> to vector<32x512xf32>
    %72 = arith.mulf %68, %71 : vector<32x512xf32>
    %73 = arith.truncf %72 : vector<32x512xf32> to vector<32x512xbf16>
    %c15_i32_35 = arith.constant 15 : i32
    %74 = tpu.dynamic_rotate %61 by %c15_i32_35 dim 1 : vector<32x512xf32>, i32 -> vector<32x512xf32>
    %c2_36 = arith.constant 2 : index
    %c0_37 = arith.constant 0 : index
    %c0_38 = arith.constant 0 : index
    %75 = vector.load %arg7[%c2_36, %c0_37, %c0_38] : memref<9x1x512xf32, #tpu.memory_space<vmem>>, vector<1x1x512xf32>
    %76 = vector.shape_cast %75 : vector<1x1x512xf32> to vector<1x512xf32>
    %77 = vector.broadcast %76 : vector<1x512xf32> to vector<32x512xf32>
    %78 = arith.mulf %74, %77 : vector<32x512xf32>
    %79 = arith.truncf %78 : vector<32x512xf32> to vector<32x512xbf16>
    %c1_i32_39 = arith.constant 1 : i32
    %80 = tpu.dynamic_rotate %61 by %c1_i32_39 dim 1 : vector<32x512xf32>, i32 -> vector<32x512xf32>
    %c3_40 = arith.constant 3 : index
    %c0_41 = arith.constant 0 : index
    %c0_42 = arith.constant 0 : index
    %81 = vector.load %arg7[%c3_40, %c0_41, %c0_42] : memref<9x1x512xf32, #tpu.memory_space<vmem>>, vector<1x1x512xf32>
    %82 = vector.shape_cast %81 : vector<1x1x512xf32> to vector<1x512xf32>
    %83 = vector.broadcast %82 : vector<1x512xf32> to vector<32x512xf32>
    %84 = arith.mulf %80, %83 : vector<32x512xf32>
    %85 = arith.truncf %84 : vector<32x512xf32> to vector<32x512xbf16>
    %86 = arith.truncf %61 : vector<32x512xf32> to vector<32x512xbf16>
    %c511_i32_43 = arith.constant 511 : i32
    %87 = tpu.dynamic_rotate %61 by %c511_i32_43 dim 1 : vector<32x512xf32>, i32 -> vector<32x512xf32>
    %c5_44 = arith.constant 5 : index
    %c0_45 = arith.constant 0 : index
    %c0_46 = arith.constant 0 : index
    %88 = vector.load %arg7[%c5_44, %c0_45, %c0_46] : memref<9x1x512xf32, #tpu.memory_space<vmem>>, vector<1x1x512xf32>
    %89 = vector.shape_cast %88 : vector<1x1x512xf32> to vector<1x512xf32>
    %90 = vector.broadcast %89 : vector<1x512xf32> to vector<32x512xf32>
    %91 = arith.mulf %87, %90 : vector<32x512xf32>
    %92 = arith.truncf %91 : vector<32x512xf32> to vector<32x512xbf16>
    %c497_i32_47 = arith.constant 497 : i32
    %93 = tpu.dynamic_rotate %61 by %c497_i32_47 dim 1 : vector<32x512xf32>, i32 -> vector<32x512xf32>
    %c6_48 = arith.constant 6 : index
    %c0_49 = arith.constant 0 : index
    %c0_50 = arith.constant 0 : index
    %94 = vector.load %arg7[%c6_48, %c0_49, %c0_50] : memref<9x1x512xf32, #tpu.memory_space<vmem>>, vector<1x1x512xf32>
    %95 = vector.shape_cast %94 : vector<1x1x512xf32> to vector<1x512xf32>
    %96 = vector.broadcast %95 : vector<1x512xf32> to vector<32x512xf32>
    %97 = arith.mulf %93, %96 : vector<32x512xf32>
    %98 = arith.truncf %97 : vector<32x512xf32> to vector<32x512xbf16>
    %c496_i32_51 = arith.constant 496 : i32
    %99 = tpu.dynamic_rotate %61 by %c496_i32_51 dim 1 : vector<32x512xf32>, i32 -> vector<32x512xf32>
    %c7_52 = arith.constant 7 : index
    %c0_53 = arith.constant 0 : index
    %c0_54 = arith.constant 0 : index
    %100 = vector.load %arg7[%c7_52, %c0_53, %c0_54] : memref<9x1x512xf32, #tpu.memory_space<vmem>>, vector<1x1x512xf32>
    %101 = vector.shape_cast %100 : vector<1x1x512xf32> to vector<1x512xf32>
    %102 = vector.broadcast %101 : vector<1x512xf32> to vector<32x512xf32>
    %103 = arith.mulf %99, %102 : vector<32x512xf32>
    %104 = arith.truncf %103 : vector<32x512xf32> to vector<32x512xbf16>
    %c495_i32_55 = arith.constant 495 : i32
    %105 = tpu.dynamic_rotate %61 by %c495_i32_55 dim 1 : vector<32x512xf32>, i32 -> vector<32x512xf32>
    %c8_56 = arith.constant 8 : index
    %c0_57 = arith.constant 0 : index
    %c0_58 = arith.constant 0 : index
    %106 = vector.load %arg7[%c8_56, %c0_57, %c0_58] : memref<9x1x512xf32, #tpu.memory_space<vmem>>, vector<1x1x512xf32>
    %107 = vector.shape_cast %106 : vector<1x1x512xf32> to vector<1x512xf32>
    %108 = vector.broadcast %107 : vector<1x512xf32> to vector<32x512xf32>
    %109 = arith.mulf %105, %108 : vector<32x512xf32>
    %110 = arith.truncf %109 : vector<32x512xf32> to vector<32x512xbf16>
    %111 = tpu.concatenate %67, %73, %79, %85, %86, %92, %98, %104, %110 in 0 : vector<32x512xbf16>, vector<32x512xbf16>, vector<32x512xbf16>, vector<32x512xbf16>, vector<32x512xbf16>, vector<32x512xbf16>, vector<32x512xbf16>, vector<32x512xbf16>, vector<32x512xbf16> -> vector<288x512xbf16>
    %c0_59 = arith.constant 0 : index
    %c0_60 = arith.constant 0 : index
    %112 = vector.load %arg5[%c0_59, %c0_60] : memref<32x288xbf16, #tpu.memory_space<vmem>>, vector<32x288xbf16>
    %cst_61 = arith.constant dense<0.000000e+00> : vector<32x512xf32>
    %113 = tpu.matmul %112, %111, %cst_61 {dimension_numbers = #tpu.dot_dimension_numbers<[1], [0], [0], [1], [0, 0, 1, 1], [], []>} : vector<32x288xbf16>, vector<288x512xbf16>, vector<32x512xf32> -> vector<32x512xf32>
    %c0_62 = arith.constant 0 : index
    %c0_63 = arith.constant 0 : index
    %114 = vector.load %arg6[%c0_62, %c0_63] : memref<32x1xf32, #tpu.memory_space<vmem>>, vector<32x1xf32>
    %115 = vector.broadcast %114 : vector<32x1xf32> to vector<32x512xf32>
    %116 = arith.addf %113, %115 : vector<32x512xf32>
    %cst_64 = arith.constant 0.000000e+00 : f32
    %117 = vector.broadcast %cst_64 : f32 to vector<32x512xf32>
    %118 = arith.maximumf %116, %117 : vector<32x512xf32>
    %c0_65 = arith.constant 0 : index
    %c0_66 = arith.constant 0 : index
    %c0_67 = arith.constant 0 : index
    %119 = vector.load %arg8[%c0_65, %c0_66, %c0_67] : memref<1x32x512xf32, #tpu.memory_space<vmem>>, vector<1x32x512xf32>
    %120 = vector.shape_cast %119 : vector<1x32x512xf32> to vector<32x512xf32>
    %121 = vector.shape_cast %118 : vector<32x512xf32> to vector<1x32x512xf32>
    tpu.vector_store %arg8[%c0_65, %c0_66, %c0_67], %121 {strides = array<i32>} : memref<1x32x512xf32, #tpu.memory_space<vmem>>, vector<1x32x512xf32>,
    return
  }
  func.func @transform_0(%arg0: i32) -> (i32, i32, i32) {
    %c0_i32 = arith.constant 0 : i32
    %c0_i32_0 = arith.constant 0 : i32
    %c0_i32_1 = arith.constant 0 : i32
    return %arg0, %c0_i32, %c0_i32_0 : i32, i32, i32
  }
  func.func @transform_1(%arg0: i32) -> (i32, i32, i32) {
    %c0_i32 = arith.constant 0 : i32
    %c0_i32_0 = arith.constant 0 : i32
    %c0_i32_1 = arith.constant 0 : i32
    return %arg0, %c0_i32, %c0_i32_0 : i32, i32, i32
  }
  func.func @transform_2(%arg0: i32) -> (i32, i32) {
    %c0_i32 = arith.constant 0 : i32
    %c0_i32_0 = arith.constant 0 : i32
    %c0_i32_1 = arith.constant 0 : i32
    return %c0_i32, %c0_i32_0 : i32, i32
  }
  func.func @transform_3(%arg0: i32) -> (i32, i32) {
    %c0_i32 = arith.constant 0 : i32
    %c0_i32_0 = arith.constant 0 : i32
    %c0_i32_1 = arith.constant 0 : i32
    return %c0_i32, %c0_i32_0 : i32, i32
  }
  func.func @transform_4(%arg0: i32) -> (i32, i32) {
    %c0_i32 = arith.constant 0 : i32
    %c0_i32_0 = arith.constant 0 : i32
    %c0_i32_1 = arith.constant 0 : i32
    return %c0_i32, %c0_i32_0 : i32, i32
  }
  func.func @transform_5(%arg0: i32) -> (i32, i32) {
    %c0_i32 = arith.constant 0 : i32
    %c0_i32_0 = arith.constant 0 : i32
    %c0_i32_1 = arith.constant 0 : i32
    return %c0_i32, %c0_i32_0 : i32, i32
  }
  func.func @transform_6(%arg0: i32) -> (i32, i32, i32) {
    %c0_i32 = arith.constant 0 : i32
    %c0_i32_0 = arith.constant 0 : i32
    %c0_i32_1 = arith.constant 0 : i32
    %c0_i32_2 = arith.constant 0 : i32
    return %c0_i32, %c0_i32_0, %c0_i32_1 : i32, i32, i32
  }
  func.func @transform_7(%arg0: i32) -> (i32, i32, i32) {
    %c0_i32 = arith.constant 0 : i32
    %c0_i32_0 = arith.constant 0 : i32
    %c0_i32_1 = arith.constant 0 : i32
    return %arg0, %c0_i32, %c0_i32_0 : i32, i32, i32
  }
}

</mosaic_0001>

<llo_original>
// kernel: ffm_forward.1
$region0: #{ffm_forward.1}
  #allocation0 [shape = 'u32[]', space=smem, size = 0x4, offset = 0x4, fixed_abs, tag = 'smem constant byte address 0x4 - core index']
  #allocation1 [shape = 'u32[72,128]{1,0:T(1,128)}', space=vmem, size = 0x9000, scoped, tag = 'internal scratch']
  %s0 = inlined_call_operand.vmem [shape: f32[1,32,512], index: 0, kind: input, shape index: {}]
  %s1 = inlined_call_operand.vmem [shape: f32[1,32,512], index: 1, kind: input, shape index: {}]
  %s2 = inlined_call_operand.vmem [shape: bf16[32,288], index: 2, kind: input, shape index: {}]
  %s3 = inlined_call_operand.vmem [shape: f32[32,1], index: 3, kind: input, shape index: {}]
  %s4 = inlined_call_operand.vmem [shape: bf16[32,288], index: 4, kind: input, shape index: {}]
  %s5 = inlined_call_operand.vmem [shape: f32[32,1], index: 5, kind: input, shape index: {}]
  %s6 = inlined_call_operand.vmem [shape: f32[9,1,512], index: 6, kind: input, shape index: {}]
  %s7 = inlined_call_operand.vmem [shape: f32[1,32,512], index: 7, kind: output, shape index: {}]
  %s8 = sld [smem:[#allocation0]]
  $region38: #{ffm_forward.1} parent=0
    _
  %s10 = ssub.s32 1, %s8
  %s11 = scalar_select 0, %s10, %s8
  // Predicated region
  $region2: #{ffm_forward.1} parent=0 // pred_check
    _
  $region3: #{ffm_forward.1} parent=0 // pred_check_branch
    %13 = sbr.rel (0) target = $region5
  $region4: #{ffm_forward.1} parent=0 // pred_region
    _
  $region5: #{ffm_forward.1} parent=0 // pred_fallthru
    _
  // Predicated region
  $region6: #{ffm_forward.1} parent=0 // pred_check
    _
  $region7: #{ffm_forward.1} parent=0 // pred_check_branch
    %15 = sbr.rel (0) target = $region9
  $region8: #{ffm_forward.1} parent=0 // pred_region
    _
  $region9: #{ffm_forward.1} parent=0 // pred_fallthru
    _
  // Predicated region
  $region10: #{ffm_forward.1} parent=0 // pred_check
    _
  $region11: #{ffm_forward.1} parent=0 // pred_check_branch
    %17 = sbr.rel (0) target = $region13
  $region12: #{ffm_forward.1} parent=0 // pred_region
    _
  $region13: #{ffm_forward.1} parent=0 // pred_fallthru
    _
  // Predicated region
  $region14: #{ffm_forward.1} parent=0 // pred_check
    _
  $region15: #{ffm_forward.1} parent=0 // pred_check_branch
    %19 = sbr.rel (0) target = $region17
  $region16: #{ffm_forward.1} parent=0 // pred_region
    _
  $region17: #{ffm_forward.1} parent=0 // pred_fallthru
    _
  // Predicated region
  $region18: #{ffm_forward.1} parent=0 // pred_check
    _
  $region19: #{ffm_forward.1} parent=0 // pred_check_branch
    %21 = sbr.rel (0) target = $region21
  $region20: #{ffm_forward.1} parent=0 // pred_region
    _
  $region21: #{ffm_forward.1} parent=0 // pred_fallthru
    _
  // Predicated region
  $region22: #{ffm_forward.1} parent=0 // pred_check
    _
  $region23: #{ffm_forward.1} parent=0 // pred_check_branch
    %23 = sbr.rel (0) target = $region25
  $region24: #{ffm_forward.1} parent=0 // pred_region
    _
  $region25: #{ffm_forward.1} parent=0 // pred_fallthru
    _
  // Predicated region
  $region26: #{ffm_forward.1} parent=0 // pred_check
    _
  $region27: #{ffm_forward.1} parent=0 // pred_check_branch
    %25 = sbr.rel (0) target = $region29
  $region28: #{ffm_forward.1} parent=0 // pred_region
    _
  $region29: #{ffm_forward.1} parent=0 // pred_fallthru
    _
  %v27 = vld [vmem:[%s0] sm:$0xff]
  %v28 = vld [vmem:[%s0 + $0x8] sm:$0xff]
  %v29 = vld [vmem:[%s0 + $0x10] sm:$0xff]
  %v30 = vld [vmem:[%s0 + $0x18] sm:$0xff]
  %v31 = vld [vmem:[%s0 + $0x20] sm:$0xff]
  %v32 = vld [vmem:[%s0 + $0x28] sm:$0xff]
  %v33 = vld [vmem:[%s0 + $0x30] sm:$0xff]
  %v34 = vld [vmem:[%s0 + $0x38] sm:$0xff]
  %v35 = vld [vmem:[%s0 + $0x40] sm:$0xff]
  %v36 = vld [vmem:[%s0 + $0x48] sm:$0xff]
  %v37 = vld [vmem:[%s0 + $0x50] sm:$0xff]
  %v38 = vld [vmem:[%s0 + $0x58] sm:$0xff]
  %v39 = vld [vmem:[%s0 + $0x60] sm:$0xff]
  %v40 = vld [vmem:[%s0 + $0x68] sm:$0xff]
  %v41 = vld [vmem:[%s0 + $0x70] sm:$0xff]
  %v42 = vld [vmem:[%s0 + $0x78] sm:$0xff]
  %v43 = vld [vmem:[%s1] sm:$0xff]
  %v44 = vld [vmem:[%s1 + $0x8] sm:$0xff]
  %v45 = vld [vmem:[%s1 + $0x10] sm:$0xff]
  %v46 = vld [vmem:[%s1 + $0x18] sm:$0xff]
  %v47 = vld [vmem:[%s1 + $0x20] sm:$0xff]
  %v48 = vld [vmem:[%s1 + $0x28] sm:$0xff]
  %v49 = vld [vmem:[%s1 + $0x30] sm:$0xff]
  %v50 = vld [vmem:[%s1 + $0x38] sm:$0xff]
  %v51 = vld [vmem:[%s1 + $0x40] sm:$0xff]
  %v52 = vld [vmem:[%s1 + $0x48] sm:$0xff]
  %v53 = vld [vmem:[%s1 + $0x50] sm:$0xff]
  %v54 = vld [vmem:[%s1 + $0x58] sm:$0xff]
  %v55 = vld [vmem:[%s1 + $0x60] sm:$0xff]
  %v56 = vld [vmem:[%s1 + $0x68] sm:$0xff]
  %v57 = vld [vmem:[%s1 + $0x70] sm:$0xff]
  %v58 = vld [vmem:[%s1 + $0x78] sm:$0xff]
  %v59 = vmul.f32 %v27, %v43
  %v60 = vmul.f32 %v28, %v44
  %v61 = vmul.f32 %v29, %v45
  %v62 = vmul.f32 %v30, %v46
  %v63 = vmul.f32 %v31, %v47
  %v64 = vmul.f32 %v32, %v48
  %v65 = vmul.f32 %v33, %v49
  %v66 = vmul.f32 %v34, %v50
  %v67 = vmul.f32 %v35, %v51
  %v68 = vmul.f32 %v36, %v52
  %v69 = vmul.f32 %v37, %v53
  %v70 = vmul.f32 %v38, %v54
  %v71 = vmul.f32 %v39, %v55
  %v72 = vmul.f32 %v40, %v56
  %v73 = vmul.f32 %v41, %v57
  %v74 = vmul.f32 %v42, %v58
  %75 = vrot.lane.b32.xlu0 %v59, 17
  %v76 = vpop.permute.xlu0 %75
  %77 = vrot.lane.b32.xlu0 %v63, 17
  %v78 = vpop.permute.xlu0 %77
  %79 = vrot.lane.b32.xlu0 %v67, 17
  %v80 = vpop.permute.xlu0 %79
  %81 = vrot.lane.b32.xlu0 %v71, 17
  %v82 = vpop.permute.xlu0 %81
  %83 = vrot.lane.b32.xlu0 %v60, 17
  %v84 = vpop.permute.xlu0 %83
  %85 = vrot.lane.b32.xlu0 %v64, 17
  %v86 = vpop.permute.xlu0 %85
  %87 = vrot.lane.b32.xlu0 %v68, 17
  %v88 = vpop.permute.xlu0 %87
  %89 = vrot.lane.b32.xlu0 %v72, 17
  %v90 = vpop.permute.xlu0 %89
  %91 = vrot.lane.b32.xlu0 %v61, 17
  %v92 = vpop.permute.xlu0 %91
  %93 = vrot.lane.b32.xlu0 %v65, 17
  %v94 = vpop.permute.xlu0 %93
  %95 = vrot.lane.b32.xlu0 %v69, 17
  %v96 = vpop.permute.xlu0 %95
  %97 = vrot.lane.b32.xlu0 %v73, 17
  %v98 = vpop.permute.xlu0 %97
  %99 = vrot.lane.b32.xlu0 %v62, 17
  %v100 = vpop.permute.xlu0 %99
  %101 = vrot.lane.b32.xlu0 %v66, 17
  %v102 = vpop.permute.xlu0 %101
  %103 = vrot.lane.b32.xlu0 %v70, 17
  %v104 = vpop.permute.xlu0 %103
  %105 = vrot.lane.b32.xlu0 %v74, 17
  %v106 = vpop.permute.xlu0 %105
  %v107 = vlaneseq
  %v108 = vand.u32 %v107, 127
  %vm109 = vcmp.lt.s32.totalorder %v108, 17
  %v110 = vsel %vm109, %v92, %v100
  %v111 = vsel %vm109, %v94, %v102
  %v112 = vsel %vm109, %v96, %v104
  %v113 = vsel %vm109, %v98, %v106
  %v114 = vsel %vm109, %v84, %v92
  %v115 = vsel %vm109, %v86, %v94
  %v116 = vsel %vm109, %v88, %v96
  %v117 = vsel %vm109, %v90, %v98
  %v118 = vsel %vm109, %v76, %v84
  %v119 = vsel %vm109, %v78, %v86
  %v120 = vsel %vm109, %v80, %v88
  %v121 = vsel %vm109, %v82, %v90
  %v122 = vsel %vm109, %v100, %v76
  %v123 = vsel %vm109, %v102, %v78
  %v124 = vsel %vm109, %v104, %v80
  %v125 = vsel %vm109, %v106, %v82
  %v126 = vld [vmem:[%s6] sm:$0xf]
  %v128 = vperm.slane %v126, 0
  %v129 = vperm.slane %v126, 1
  %v130 = vperm.slane %v126, 2
  %v131 = vperm.slane %v126, 3
  %v136 = vmul.f32 %v122, %v128
  %v137 = vmul.f32 %v118, %v129
  %v138 = vmul.f32 %v114, %v130
  %v139 = vmul.f32 %v110, %v131
  %v140 = vmul.f32 %v123, %v128
  %v141 = vmul.f32 %v119, %v129
  %v142 = vmul.f32 %v115, %v130
  %v143 = vmul.f32 %v111, %v131
  %v144 = vmul.f32 %v124, %v128
  %v145 = vmul.f32 %v120, %v129
  %v146 = vmul.f32 %v116, %v130
  %v147 = vmul.f32 %v112, %v131
  %v148 = vmul.f32 %v125, %v128
  %v149 = vmul.f32 %v121, %v129
  %v150 = vmul.f32 %v117, %v130
  %v151 = vmul.f32 %v113, %v131
  %v152 = vpack.c.bf16 %v137, %v136
  %v153 = vpack.c.bf16 %v139, %v138
  %v154 = vpack.c.bf16 %v141, %v140
  %v155 = vpack.c.bf16 %v143, %v142
  %v156 = vpack.c.bf16 %v145, %v144
  %v157 = vpack.c.bf16 %v147, %v146
  %v158 = vpack.c.bf16 %v149, %v148
  %v159 = vpack.c.bf16 %v151, %v150
  %160 = vrot.lane.b32.xlu0 %v59, 16
  %v161 = vpop.permute.xlu0 %160
  %162 = vrot.lane.b32.xlu0 %v63, 16
  %v163 = vpop.permute.xlu0 %162
  %164 = vrot.lane.b32.xlu0 %v67, 16
  %v165 = vpop.permute.xlu0 %164
  %166 = vrot.lane.b32.xlu0 %v71, 16
  %v167 = vpop.permute.xlu0 %166
  %168 = vrot.lane.b32.xlu0 %v60, 16
  %v169 = vpop.permute.xlu0 %168
  %170 = vrot.lane.b32.xlu0 %v64, 16
  %v171 = vpop.permute.xlu0 %170
  %172 = vrot.lane.b32.xlu0 %v68, 16
  %v173 = vpop.permute.xlu0 %172
  %174 = vrot.lane.b32.xlu0 %v72, 16
  %v175 = vpop.permute.xlu0 %174
  %176 = vrot.lane.b32.xlu0 %v61, 16
  %v177 = vpop.permute.xlu0 %176
  %178 = vrot.lane.b32.xlu0 %v65, 16
  %v179 = vpop.permute.xlu0 %178
  %180 = vrot.lane.b32.xlu0 %v69, 16
  %v181 = vpop.permute.xlu0 %180
  %182 = vrot.lane.b32.xlu0 %v73, 16
  %v183 = vpop.permute.xlu0 %182
  %184 = vrot.lane.b32.xlu0 %v62, 16
  %v185 = vpop.permute.xlu0 %184
  %186 = vrot.lane.b32.xlu0 %v66, 16
  %v187 = vpop.permute.xlu0 %186
  %188 = vrot.lane.b32.xlu0 %v70, 16
  %v189 = vpop.permute.xlu0 %188
  %190 = vrot.lane.b32.xlu0 %v74, 16
  %v191 = vpop.permute.xlu0 %190
  %vm192 = vcmp.lt.s32.totalorder %v108, 16
  %v193 = vsel %vm192, %v177, %v185
  %v194 = vsel %vm192, %v179, %v187
  %v195 = vsel %vm192, %v181, %v189
  %v196 = vsel %vm192, %v183, %v191
  %v197 = vsel %vm192, %v169, %v177
  %v198 = vsel %vm192, %v171, %v179
  %v199 = vsel %vm192, %v173, %v181
  %v200 = vsel %vm192, %v175, %v183
  %v201 = vsel %vm192, %v161, %v169
  %v202 = vsel %vm192, %v163, %v171
  %v203 = vsel %vm192, %v165, %v173
  %v204 = vsel %vm192, %v167, %v175
  %v205 = vsel %vm192, %v185, %v161
  %v206 = vsel %vm192, %v187, %v163
  %v207 = vsel %vm192, %v189, %v165
  %v208 = vsel %vm192, %v191, %v167
  %s209 = scalar_lea.vmem %s6, 4
  %v210 = vld [vmem:[%s209] sm:$0xf]
  %v212 = vperm.slane %v210, 0
  %v213 = vperm.slane %v210, 1
  %v214 = vperm.slane %v210, 2
  %v215 = vperm.slane %v210, 3
  %v220 = vmul.f32 %v205, %v212
  %v221 = vmul.f32 %v201, %v213
  %v222 = vmul.f32 %v197, %v214
  %v223 = vmul.f32 %v193, %v215
  %v224 = vmul.f32 %v206, %v212
  %v225 = vmul.f32 %v202, %v213
  %v226 = vmul.f32 %v198, %v214
  %v227 = vmul.f32 %v194, %v215
  %v228 = vmul.f32 %v207, %v212
  %v229 = vmul.f32 %v203, %v213
  %v230 = vmul.f32 %v199, %v214
  %v231 = vmul.f32 %v195, %v215
  %v232 = vmul.f32 %v208, %v212
  %v233 = vmul.f32 %v204, %v213
  %v234 = vmul.f32 %v200, %v214
  %v235 = vmul.f32 %v196, %v215
  %v236 = vpack.c.bf16 %v221, %v220
  %v237 = vpack.c.bf16 %v223, %v222
  %v238 = vpack.c.bf16 %v225, %v224
  %v239 = vpack.c.bf16 %v227, %v226
  %v240 = vpack.c.bf16 %v229, %v228
  %v241 = vpack.c.bf16 %v231, %v230
  %v242 = vpack.c.bf16 %v233, %v232
  %v243 = vpack.c.bf16 %v235, %v234
  %244 = vrot.lane.b32.xlu0 %v59, 15
  %v245 = vpop.permute.xlu0 %244
  %246 = vrot.lane.b32.xlu0 %v63, 15
  %v247 = vpop.permute.xlu0 %246
  %248 = vrot.lane.b32.xlu0 %v67, 15
  %v249 = vpop.permute.xlu0 %248
  %250 = vrot.lane.b32.xlu0 %v71, 15
  %v251 = vpop.permute.xlu0 %250
  %252 = vrot.lane.b32.xlu0 %v60, 15
  %v253 = vpop.permute.xlu0 %252
  %254 = vrot.lane.b32.xlu0 %v64, 15
  %v255 = vpop.permute.xlu0 %254
  %256 = vrot.lane.b32.xlu0 %v68, 15
  %v257 = vpop.permute.xlu0 %256
  %258 = vrot.lane.b32.xlu0 %v72, 15
  %v259 = vpop.permute.xlu0 %258
  %260 = vrot.lane.b32.xlu0 %v61, 15
  %v261 = vpop.permute.xlu0 %260
  %262 = vrot.lane.b32.xlu0 %v65, 15
  %v263 = vpop.permute.xlu0 %262
  %264 = vrot.lane.b32.xlu0 %v69, 15
  %v265 = vpop.permute.xlu0 %264
  %266 = vrot.lane.b32.xlu0 %v73, 15
  %v267 = vpop.permute.xlu0 %266
  %268 = vrot.lane.b32.xlu0 %v62, 15
  %v269 = vpop.permute.xlu0 %268
  %270 = vrot.lane.b32.xlu0 %v66, 15
  %v271 = vpop.permute.xlu0 %270
  %272 = vrot.lane.b32.xlu0 %v70, 15
  %v273 = vpop.permute.xlu0 %272
  %274 = vrot.lane.b32.xlu0 %v74, 15
  %v275 = vpop.permute.xlu0 %274
  %vm276 = vcmp.lt.s32.totalorder %v108, 15
  %v277 = vsel %vm276, %v261, %v269
  %v278 = vsel %vm276, %v263, %v271
  %v279 = vsel %vm276, %v265, %v273
  %v280 = vsel %vm276, %v267, %v275
  %v281 = vsel %vm276, %v253, %v261
  %v282 = vsel %vm276, %v255, %v263
  %v283 = vsel %vm276, %v257, %v265
  %v284 = vsel %vm276, %v259, %v267
  %v285 = vsel %vm276, %v245, %v253
  %v286 = vsel %vm276, %v247, %v255
  %v287 = vsel %vm276, %v249, %v257
  %v288 = vsel %vm276, %v251, %v259
  %v289 = vsel %vm276, %v269, %v245
  %v290 = vsel %vm276, %v271, %v247
  %v291 = vsel %vm276, %v273, %v249
  %v292 = vsel %vm276, %v275, %v251
  %s293 = scalar_lea.vmem %s6, 8
  %v294 = vld [vmem:[%s293] sm:$0xf]
  %v296 = vperm.slane %v294, 0
  %v297 = vperm.slane %v294, 1
  %v298 = vperm.slane %v294, 2
  %v299 = vperm.slane %v294, 3
  %v304 = vmul.f32 %v289, %v296
  %v305 = vmul.f32 %v285, %v297
  %v306 = vmul.f32 %v281, %v298
  %v307 = vmul.f32 %v277, %v299
  %v308 = vmul.f32 %v290, %v296
  %v309 = vmul.f32 %v286, %v297
  %v310 = vmul.f32 %v282, %v298
  %v311 = vmul.f32 %v278, %v299
  %v312 = vmul.f32 %v291, %v296
  %v313 = vmul.f32 %v287, %v297
  %v314 = vmul.f32 %v283, %v298
  %v315 = vmul.f32 %v279, %v299
  %v316 = vmul.f32 %v292, %v296
  %v317 = vmul.f32 %v288, %v297
  %v318 = vmul.f32 %v284, %v298
  %v319 = vmul.f32 %v280, %v299
  %v320 = vpack.c.bf16 %v305, %v304
  %v321 = vpack.c.bf16 %v307, %v306
  %v322 = vpack.c.bf16 %v309, %v308
  %v323 = vpack.c.bf16 %v311, %v310
  %v324 = vpack.c.bf16 %v313, %v312
  %v325 = vpack.c.bf16 %v315, %v314
  %v326 = vpack.c.bf16 %v317, %v316
  %v327 = vpack.c.bf16 %v319, %v318
  %328 = vrot.lane.b32.xlu0 %v59, 1
  %v329 = vpop.permute.xlu0 %328
  %330 = vrot.lane.b32.xlu0 %v63, 1
  %v331 = vpop.permute.xlu0 %330
  %332 = vrot.lane.b32.xlu0 %v67, 1
  %v333 = vpop.permute.xlu0 %332
  %334 = vrot.lane.b32.xlu0 %v71, 1
  %v335 = vpop.permute.xlu0 %334
  %336 = vrot.lane.b32.xlu0 %v60, 1
  %v337 = vpop.permute.xlu0 %336
  %338 = vrot.lane.b32.xlu0 %v64, 1
  %v339 = vpop.permute.xlu0 %338
  %340 = vrot.lane.b32.xlu0 %v68, 1
  %v341 = vpop.permute.xlu0 %340
  %342 = vrot.lane.b32.xlu0 %v72, 1
  %v343 = vpop.permute.xlu0 %342
  %344 = vrot.lane.b32.xlu0 %v61, 1
  %v345 = vpop.permute.xlu0 %344
  %346 = vrot.lane.b32.xlu0 %v65, 1
  %v347 = vpop.permute.xlu0 %346
  %348 = vrot.lane.b32.xlu0 %v69, 1
  %v349 = vpop.permute.xlu0 %348
  %350 = vrot.lane.b32.xlu0 %v73, 1
  %v351 = vpop.permute.xlu0 %350
  %352 = vrot.lane.b32.xlu0 %v62, 1
  %v353 = vpop.permute.xlu0 %352
  %354 = vrot.lane.b32.xlu0 %v66, 1
  %v355 = vpop.permute.xlu0 %354
  %356 = vrot.lane.b32.xlu0 %v70, 1
  %v357 = vpop.permute.xlu0 %356
  %358 = vrot.lane.b32.xlu0 %v74, 1
  %v359 = vpop.permute.xlu0 %358
  %vm360 = vcmp.lt.s32.totalorder %v108, 1
  %v361 = vsel %vm360, %v345, %v353
  %v362 = vsel %vm360, %v347, %v355
  %v363 = vsel %vm360, %v349, %v357
  %v364 = vsel %vm360, %v351, %v359
  %v365 = vsel %vm360, %v337, %v345
  %v366 = vsel %vm360, %v339, %v347
  %v367 = vsel %vm360, %v341, %v349
  %v368 = vsel %vm360, %v343, %v351
  %v369 = vsel %vm360, %v329, %v337
  %v370 = vsel %vm360, %v331, %v339
  %v371 = vsel %vm360, %v333, %v341
  %v372 = vsel %vm360, %v335, %v343
  %v373 = vsel %vm360, %v353, %v329
  %v374 = vsel %vm360, %v355, %v331
  %v375 = vsel %vm360, %v357, %v333
  %v376 = vsel %vm360, %v359, %v335
  %s377 = scalar_lea.vmem %s6, 12
  %v378 = vld [vmem:[%s377] sm:$0xf]
  %v380 = vperm.slane %v378, 0
  %v381 = vperm.slane %v378, 1
  %v382 = vperm.slane %v378, 2
  %v383 = vperm.slane %v378, 3
  %v388 = vmul.f32 %v373, %v380
  %v389 = vmul.f32 %v369, %v381
  %v390 = vmul.f32 %v365, %v382
  %v391 = vmul.f32 %v361, %v383
  %v392 = vmul.f32 %v374, %v380
  %v393 = vmul.f32 %v370, %v381
  %v394 = vmul.f32 %v366, %v382
  %v395 = vmul.f32 %v362, %v383
  %v396 = vmul.f32 %v375, %v380
  %v397 = vmul.f32 %v371, %v381
  %v398 = vmul.f32 %v367, %v382
  %v399 = vmul.f32 %v363, %v383
  %v400 = vmul.f32 %v376, %v380
  %v401 = vmul.f32 %v372, %v381
  %v402 = vmul.f32 %v368, %v382
  %v403 = vmul.f32 %v364, %v383
  %v404 = vpack.c.bf16 %v389, %v388
  %v405 = vpack.c.bf16 %v391, %v390
  %v406 = vpack.c.bf16 %v393, %v392
  %v407 = vpack.c.bf16 %v395, %v394
  %v408 = vpack.c.bf16 %v397, %v396
  %v409 = vpack.c.bf16 %v399, %v398
  %v410 = vpack.c.bf16 %v401, %v400
  %v411 = vpack.c.bf16 %v403, %v402
  %v412 = vpack.c.bf16 %v60, %v59
  %v413 = vpack.c.bf16 %v62, %v61
  %v414 = vpack.c.bf16 %v64, %v63
  %v415 = vpack.c.bf16 %v66, %v65
  %v416 = vpack.c.bf16 %v68, %v67
  %v417 = vpack.c.bf16 %v70, %v69
  %v418 = vpack.c.bf16 %v72, %v71
  %v419 = vpack.c.bf16 %v74, %v73
  %420 = vrot.lane.b32.xlu0 %v59, 127
  %v421 = vpop.permute.xlu0 %420
  %422 = vrot.lane.b32.xlu0 %v63, 127
  %v423 = vpop.permute.xlu0 %422
  %424 = vrot.lane.b32.xlu0 %v67, 127
  %v425 = vpop.permute.xlu0 %424
  %426 = vrot.lane.b32.xlu0 %v71, 127
  %v427 = vpop.permute.xlu0 %426
  %428 = vrot.lane.b32.xlu0 %v60, 127
  %v429 = vpop.permute.xlu0 %428
  %430 = vrot.lane.b32.xlu0 %v64, 127
  %v431 = vpop.permute.xlu0 %430
  %432 = vrot.lane.b32.xlu0 %v68, 127
  %v433 = vpop.permute.xlu0 %432
  %434 = vrot.lane.b32.xlu0 %v72, 127
  %v435 = vpop.permute.xlu0 %434
  %436 = vrot.lane.b32.xlu0 %v61, 127
  %v437 = vpop.permute.xlu0 %436
  %438 = vrot.lane.b32.xlu0 %v65, 127
  %v439 = vpop.permute.xlu0 %438
  %440 = vrot.lane.b32.xlu0 %v69, 127
  %v441 = vpop.permute.xlu0 %440
  %442 = vrot.lane.b32.xlu0 %v73, 127
  %v443 = vpop.permute.xlu0 %442
  %444 = vrot.lane.b32.xlu0 %v62, 127
  %v445 = vpop.permute.xlu0 %444
  %446 = vrot.lane.b32.xlu0 %v66, 127
  %v447 = vpop.permute.xlu0 %446
  %448 = vrot.lane.b32.xlu0 %v70, 127
  %v449 = vpop.permute.xlu0 %448
  %450 = vrot.lane.b32.xlu0 %v74, 127
  %v451 = vpop.permute.xlu0 %450
  %vm452 = vcmp.lt.s32.totalorder %v108, 127
  %v453 = vsel %vm452, %v437, %v445
  %v454 = vsel %vm452, %v439, %v447
  %v455 = vsel %vm452, %v441, %v449
  %v456 = vsel %vm452, %v443, %v451
  %v457 = vsel %vm452, %v429, %v437
  %v458 = vsel %vm452, %v431, %v439
  %v459 = vsel %vm452, %v433, %v441
  %v460 = vsel %vm452, %v435, %v443
  %v461 = vsel %vm452, %v421, %v429
  %v462 = vsel %vm452, %v423, %v431
  %v463 = vsel %vm452, %v425, %v433
  %v464 = vsel %vm452, %v427, %v435
  %v465 = vsel %vm452, %v445, %v421
  %v466 = vsel %vm452, %v447, %v423
  %v467 = vsel %vm452, %v449, %v425
  %v468 = vsel %vm452, %v451, %v427
  %s469 = scalar_lea.vmem %s6, 20
  %v470 = vld [vmem:[%s469] sm:$0xf]
  %v472 = vperm.slane %v470, 0
  %v473 = vperm.slane %v470, 1
  %v474 = vperm.slane %v470, 2
  %v475 = vperm.slane %v470, 3
  %v480 = vmul.f32 %v461, %v472
  %v481 = vmul.f32 %v457, %v473
  %v482 = vmul.f32 %v453, %v474
  %v483 = vmul.f32 %v465, %v475
  %v484 = vmul.f32 %v462, %v472
  %v485 = vmul.f32 %v458, %v473
  %v486 = vmul.f32 %v454, %v474
  %v487 = vmul.f32 %v466, %v475
  %v488 = vmul.f32 %v463, %v472
  %v489 = vmul.f32 %v459, %v473
  %v490 = vmul.f32 %v455, %v474
  %v491 = vmul.f32 %v467, %v475
  %v492 = vmul.f32 %v464, %v472
  %v493 = vmul.f32 %v460, %v473
  %v494 = vmul.f32 %v456, %v474
  %v495 = vmul.f32 %v468, %v475
  %v496 = vpack.c.bf16 %v481, %v480
  %v497 = vpack.c.bf16 %v483, %v482
  %v498 = vpack.c.bf16 %v485, %v484
  %v499 = vpack.c.bf16 %v487, %v486
  %v500 = vpack.c.bf16 %v489, %v488
  %v501 = vpack.c.bf16 %v491, %v490
  %v502 = vpack.c.bf16 %v493, %v492
  %v503 = vpack.c.bf16 %v495, %v494
  %504 = vrot.lane.b32.xlu0 %v59, 113
  %v505 = vpop.permute.xlu0 %504
  %506 = vrot.lane.b32.xlu0 %v63, 113
  %v507 = vpop.permute.xlu0 %506
  %508 = vrot.lane.b32.xlu0 %v67, 113
  %v509 = vpop.permute.xlu0 %508
  %510 = vrot.lane.b32.xlu0 %v71, 113
  %v511 = vpop.permute.xlu0 %510
  %512 = vrot.lane.b32.xlu0 %v60, 113
  %v513 = vpop.permute.xlu0 %512
  %514 = vrot.lane.b32.xlu0 %v64, 113
  %v515 = vpop.permute.xlu0 %514
  %516 = vrot.lane.b32.xlu0 %v68, 113
  %v517 = vpop.permute.xlu0 %516
  %518 = vrot.lane.b32.xlu0 %v72, 113
  %v519 = vpop.permute.xlu0 %518
  %520 = vrot.lane.b32.xlu0 %v61, 113
  %v521 = vpop.permute.xlu0 %520
  %522 = vrot.lane.b32.xlu0 %v65, 113
  %v523 = vpop.permute.xlu0 %522
  %524 = vrot.lane.b32.xlu0 %v69, 113
  %v525 = vpop.permute.xlu0 %524
  %526 = vrot.lane.b32.xlu0 %v73, 113
  %v527 = vpop.permute.xlu0 %526
  %528 = vrot.lane.b32.xlu0 %v62, 113
  %v529 = vpop.permute.xlu0 %528
  %530 = vrot.lane.b32.xlu0 %v66, 113
  %v531 = vpop.permute.xlu0 %530
  %532 = vrot.lane.b32.xlu0 %v70, 113
  %v533 = vpop.permute.xlu0 %532
  %534 = vrot.lane.b32.xlu0 %v74, 113
  %v535 = vpop.permute.xlu0 %534
  %vm536 = vcmp.lt.s32.totalorder %v108, 113
  %v537 = vsel %vm536, %v521, %v529
  %v538 = vsel %vm536, %v523, %v531
  %v539 = vsel %vm536, %v525, %v533
  %v540 = vsel %vm536, %v527, %v535
  %v541 = vsel %vm536, %v513, %v521
  %v542 = vsel %vm536, %v515, %v523
  %v543 = vsel %vm536, %v517, %v525
  %v544 = vsel %vm536, %v519, %v527
  %v545 = vsel %vm536, %v505, %v513
  %v546 = vsel %vm536, %v507, %v515
  %v547 = vsel %vm536, %v509, %v517
  %v548 = vsel %vm536, %v511, %v519
  %v549 = vsel %vm536, %v529, %v505
  %v550 = vsel %vm536, %v531, %v507
  %v551 = vsel %vm536, %v533, %v509
  %v552 = vsel %vm536, %v535, %v511
  %s553 = scalar_lea.vmem %s6, 24
  %v554 = vld [vmem:[%s553] sm:$0xf]
  %v556 = vperm.slane %v554, 0
  %v557 = vperm.slane %v554, 1
  %v558 = vperm.slane %v554, 2
  %v559 = vperm.slane %v554, 3
  %v564 = vmul.f32 %v545, %v556
  %v565 = vmul.f32 %v541, %v557
  %v566 = vmul.f32 %v537, %v558
  %v567 = vmul.f32 %v549, %v559
  %v568 = vmul.f32 %v546, %v556
  %v569 = vmul.f32 %v542, %v557
  %v570 = vmul.f32 %v538, %v558
  %v571 = vmul.f32 %v550, %v559
  %v572 = vmul.f32 %v547, %v556
  %v573 = vmul.f32 %v543, %v557
  %v574 = vmul.f32 %v539, %v558
  %v575 = vmul.f32 %v551, %v559
  %v576 = vmul.f32 %v548, %v556
  %v577 = vmul.f32 %v544, %v557
  %v578 = vmul.f32 %v540, %v558
  %v579 = vmul.f32 %v552, %v559
  %v580 = vpack.c.bf16 %v565, %v564
  %v581 = vpack.c.bf16 %v567, %v566
  %v582 = vpack.c.bf16 %v569, %v568
  %v583 = vpack.c.bf16 %v571, %v570
  %v584 = vpack.c.bf16 %v573, %v572
  %v585 = vpack.c.bf16 %v575, %v574
  %v586 = vpack.c.bf16 %v577, %v576
  %v587 = vpack.c.bf16 %v579, %v578
  %588 = vrot.lane.b32.xlu0 %v59, 112
  %v589 = vpop.permute.xlu0 %588
  %590 = vrot.lane.b32.xlu0 %v63, 112
  %v591 = vpop.permute.xlu0 %590
  %592 = vrot.lane.b32.xlu0 %v67, 112
  %v593 = vpop.permute.xlu0 %592
  %594 = vrot.lane.b32.xlu0 %v71, 112
  %v595 = vpop.permute.xlu0 %594
  %596 = vrot.lane.b32.xlu0 %v60, 112
  %v597 = vpop.permute.xlu0 %596
  %598 = vrot.lane.b32.xlu0 %v64, 112
  %v599 = vpop.permute.xlu0 %598
  %600 = vrot.lane.b32.xlu0 %v68, 112
  %v601 = vpop.permute.xlu0 %600
  %602 = vrot.lane.b32.xlu0 %v72, 112
  %v603 = vpop.permute.xlu0 %602
  %604 = vrot.lane.b32.xlu0 %v61, 112
  %v605 = vpop.permute.xlu0 %604
  %606 = vrot.lane.b32.xlu0 %v65, 112
  %v607 = vpop.permute.xlu0 %606
  %608 = vrot.lane.b32.xlu0 %v69, 112
  %v609 = vpop.permute.xlu0 %608
  %610 = vrot.lane.b32.xlu0 %v73, 112
  %v611 = vpop.permute.xlu0 %610
  %612 = vrot.lane.b32.xlu0 %v62, 112
  %v613 = vpop.permute.xlu0 %612
  %614 = vrot.lane.b32.xlu0 %v66, 112
  %v615 = vpop.permute.xlu0 %614
  %616 = vrot.lane.b32.xlu0 %v70, 112
  %v617 = vpop.permute.xlu0 %616
  %618 = vrot.lane.b32.xlu0 %v74, 112
  %v619 = vpop.permute.xlu0 %618
  %vm620 = vcmp.lt.s32.totalorder %v108, 112
  %v621 = vsel %vm620, %v605, %v613
  %v622 = vsel %vm620, %v607, %v615
  %v623 = vsel %vm620, %v609, %v617
  %v624 = vsel %vm620, %v611, %v619
  %v625 = vsel %vm620, %v597, %v605
  %v626 = vsel %vm620, %v599, %v607
  %v627 = vsel %vm620, %v601, %v609
  %v628 = vsel %vm620, %v603, %v611
  %v629 = vsel %vm620, %v589, %v597
  %v630 = vsel %vm620, %v591, %v599
  %v631 = vsel %vm620, %v593, %v601
  %v632 = vsel %vm620, %v595, %v603
  %v633 = vsel %vm620, %v613, %v589
  %v634 = vsel %vm620, %v615, %v591
  %v635 = vsel %vm620, %v617, %v593
  %v636 = vsel %vm620, %v619, %v595
  %s637 = scalar_lea.vmem %s6, 28
  %v638 = vld [vmem:[%s637] sm:$0xf]
  %v640 = vperm.slane %v638, 0
  %v641 = vperm.slane %v638, 1
  %v642 = vperm.slane %v638, 2
  %v643 = vperm.slane %v638, 3
  %v648 = vmul.f32 %v629, %v640
  %v649 = vmul.f32 %v625, %v641
  %v650 = vmul.f32 %v621, %v642
  %v651 = vmul.f32 %v633, %v643
  %v652 = vmul.f32 %v630, %v640
  %v653 = vmul.f32 %v626, %v641
  %v654 = vmul.f32 %v622, %v642
  %v655 = vmul.f32 %v634, %v643
  %v656 = vmul.f32 %v631, %v640
  %v657 = vmul.f32 %v627, %v641
  %v658 = vmul.f32 %v623, %v642
  %v659 = vmul.f32 %v635, %v643
  %v660 = vmul.f32 %v632, %v640
  %v661 = vmul.f32 %v628, %v641
  %v662 = vmul.f32 %v624, %v642
  %v663 = vmul.f32 %v636, %v643
  %v664 = vpack.c.bf16 %v649, %v648
  %v665 = vpack.c.bf16 %v651, %v650
  %v666 = vpack.c.bf16 %v653, %v652
  %v667 = vpack.c.bf16 %v655, %v654
  %v668 = vpack.c.bf16 %v657, %v656
  %v669 = vpack.c.bf16 %v659, %v658
  %v670 = vpack.c.bf16 %v661, %v660
  %v671 = vpack.c.bf16 %v663, %v662
  %672 = vrot.lane.b32.xlu0 %v59, 111
  %v673 = vpop.permute.xlu0 %672
  %674 = vrot.lane.b32.xlu0 %v63, 111
  %v675 = vpop.permute.xlu0 %674
  %676 = vrot.lane.b32.xlu0 %v67, 111
  %v677 = vpop.permute.xlu0 %676
  %678 = vrot.lane.b32.xlu0 %v71, 111
  %v679 = vpop.permute.xlu0 %678
  %680 = vrot.lane.b32.xlu0 %v60, 111
  %v681 = vpop.permute.xlu0 %680
  %682 = vrot.lane.b32.xlu0 %v64, 111
  %v683 = vpop.permute.xlu0 %682
  %684 = vrot.lane.b32.xlu0 %v68, 111
  %v685 = vpop.permute.xlu0 %684
  %686 = vrot.lane.b32.xlu0 %v72, 111
  %v687 = vpop.permute.xlu0 %686
  %688 = vrot.lane.b32.xlu0 %v61, 111
  %v689 = vpop.permute.xlu0 %688
  %690 = vrot.lane.b32.xlu0 %v65, 111
  %v691 = vpop.permute.xlu0 %690
  %692 = vrot.lane.b32.xlu0 %v69, 111
  %v693 = vpop.permute.xlu0 %692
  %694 = vrot.lane.b32.xlu0 %v73, 111
  %v695 = vpop.permute.xlu0 %694
  %696 = vrot.lane.b32.xlu0 %v62, 111
  %v697 = vpop.permute.xlu0 %696
  %698 = vrot.lane.b32.xlu0 %v66, 111
  %v699 = vpop.permute.xlu0 %698
  %700 = vrot.lane.b32.xlu0 %v70, 111
  %v701 = vpop.permute.xlu0 %700
  %702 = vrot.lane.b32.xlu0 %v74, 111
  %v703 = vpop.permute.xlu0 %702
  %vm704 = vcmp.lt.s32.totalorder %v108, 111
  %v705 = vsel %vm704, %v689, %v697
  %v706 = vsel %vm704, %v691, %v699
  %v707 = vsel %vm704, %v693, %v701
  %v708 = vsel %vm704, %v695, %v703
  %v709 = vsel %vm704, %v681, %v689
  %v710 = vsel %vm704, %v683, %v691
  %v711 = vsel %vm704, %v685, %v693
  %v712 = vsel %vm704, %v687, %v695
  %v713 = vsel %vm704, %v673, %v681
  %v714 = vsel %vm704, %v675, %v683
  %v715 = vsel %vm704, %v677, %v685
  %v716 = vsel %vm704, %v679, %v687
  %v717 = vsel %vm704, %v697, %v673
  %v718 = vsel %vm704, %v699, %v675
  %v719 = vsel %vm704, %v701, %v677
  %v720 = vsel %vm704, %v703, %v679
  %s721 = scalar_lea.vmem %s6, 32
  %v722 = vld [vmem:[%s721] sm:$0xf]
  %v724 = vperm.slane %v722, 0
  %v725 = vperm.slane %v722, 1
  %v726 = vperm.slane %v722, 2
  %v727 = vperm.slane %v722, 3
  %v732 = vmul.f32 %v713, %v724
  %v733 = vmul.f32 %v709, %v725
  %v734 = vmul.f32 %v705, %v726
  %v735 = vmul.f32 %v717, %v727
  %v736 = vmul.f32 %v714, %v724
  %v737 = vmul.f32 %v710, %v725
  %v738 = vmul.f32 %v706, %v726
  %v739 = vmul.f32 %v718, %v727
  %v740 = vmul.f32 %v715, %v724
  %v741 = vmul.f32 %v711, %v725
  %v742 = vmul.f32 %v707, %v726
  %v743 = vmul.f32 %v719, %v727
  %v744 = vmul.f32 %v716, %v724
  %v745 = vmul.f32 %v712, %v725
  %v746 = vmul.f32 %v708, %v726
  %v747 = vmul.f32 %v720, %v727
  %v748 = vpack.c.bf16 %v733, %v732
  %v749 = vpack.c.bf16 %v735, %v734
  %v750 = vpack.c.bf16 %v737, %v736
  %v751 = vpack.c.bf16 %v739, %v738
  %v752 = vpack.c.bf16 %v741, %v740
  %v753 = vpack.c.bf16 %v743, %v742
  %v754 = vpack.c.bf16 %v745, %v744
  %v755 = vpack.c.bf16 %v747, %v746
  %v764 = vunpack.c.l.b16 %v152
  %v765 = vunpack.c.h.b16 %v152
  %v766 = vunpack.c.l.b16 %v153
  %v767 = vunpack.c.h.b16 %v153
  %v768 = vunpack.c.l.b16 %v154
  %v769 = vunpack.c.h.b16 %v154
  %v770 = vunpack.c.l.b16 %v155
  %v771 = vunpack.c.h.b16 %v155
  %v772 = vunpack.c.l.b16 %v156
  %v773 = vunpack.c.h.b16 %v156
  %v774 = vunpack.c.l.b16 %v157
  %v775 = vunpack.c.h.b16 %v157
  %v776 = vunpack.c.l.b16 %v158
  %v777 = vunpack.c.h.b16 %v158
  %v778 = vunpack.c.l.b16 %v159
  %v779 = vunpack.c.h.b16 %v159
  %v780 = vpack.c.b16 %v768, %v764
  %v781 = vpack.c.b16 %v769, %v765
  %v782 = vpack.c.b16 %v770, %v766
  %v783 = vpack.c.b16 %v771, %v767
  %v784 = vpack.c.b16 %v776, %v772
  %v785 = vpack.c.b16 %v777, %v773
  %v786 = vpack.c.b16 %v778, %v774
  %v787 = vpack.c.b16 %v779, %v775
  %v804 = vunpack.c.l.b16 %v236
  %v805 = vunpack.c.h.b16 %v236
  %v806 = vunpack.c.l.b16 %v237
  %v807 = vunpack.c.h.b16 %v237
  %v808 = vunpack.c.l.b16 %v238
  %v809 = vunpack.c.h.b16 %v238
  %v810 = vunpack.c.l.b16 %v239
  %v811 = vunpack.c.h.b16 %v239
  %v812 = vunpack.c.l.b16 %v240
  %v813 = vunpack.c.h.b16 %v240
  %v814 = vunpack.c.l.b16 %v241
  %v815 = vunpack.c.h.b16 %v241
  %v816 = vunpack.c.l.b16 %v242
  %v817 = vunpack.c.h.b16 %v242
  %v818 = vunpack.c.l.b16 %v243
  %v819 = vunpack.c.h.b16 %v243
  %v820 = vpack.c.b16 %v808, %v804
  %v821 = vpack.c.b16 %v809, %v805
  %v822 = vpack.c.b16 %v810, %v806
  %v823 = vpack.c.b16 %v811, %v807
  %v824 = vpack.c.b16 %v816, %v812
  %v825 = vpack.c.b16 %v817, %v813
  %v826 = vpack.c.b16 %v818, %v814
  %v827 = vpack.c.b16 %v819, %v815
  %v844 = vunpack.c.l.b16 %v320
  %v845 = vunpack.c.h.b16 %v320
  %v846 = vunpack.c.l.b16 %v321
  %v847 = vunpack.c.h.b16 %v321
  %v848 = vunpack.c.l.b16 %v322
  %v849 = vunpack.c.h.b16 %v322
  %v850 = vunpack.c.l.b16 %v323
  %v851 = vunpack.c.h.b16 %v323
  %v852 = vunpack.c.l.b16 %v324
  %v853 = vunpack.c.h.b16 %v324
  %v854 = vunpack.c.l.b16 %v325
  %v855 = vunpack.c.h.b16 %v325
  %v856 = vunpack.c.l.b16 %v326
  %v857 = vunpack.c.h.b16 %v326
  %v858 = vunpack.c.l.b16 %v327
  %v859 = vunpack.c.h.b16 %v327
  %v860 = vpack.c.b16 %v848, %v844
  %v861 = vpack.c.b16 %v849, %v845
  %v862 = vpack.c.b16 %v850, %v846
  %v863 = vpack.c.b16 %v851, %v847
  %v864 = vpack.c.b16 %v856, %v852
  %v865 = vpack.c.b16 %v857, %v853
  %v866 = vpack.c.b16 %v858, %v854
  %v867 = vpack.c.b16 %v859, %v855
  %v884 = vunpack.c.l.b16 %v404
  %v885 = vunpack.c.h.b16 %v404
  %v886 = vunpack.c.l.b16 %v405
  %v887 = vunpack.c.h.b16 %v405
  %v888 = vunpack.c.l.b16 %v406
  %v889 = vunpack.c.h.b16 %v406
  %v890 = vunpack.c.l.b16 %v407
  %v891 = vunpack.c.h.b16 %v407
  %v892 = vunpack.c.l.b16 %v408
  %v893 = vunpack.c.h.b16 %v408
  %v894 = vunpack.c.l.b16 %v409
  %v895 = vunpack.c.h.b16 %v409
  %v896 = vunpack.c.l.b16 %v410
  %v897 = vunpack.c.h.b16 %v410
  %v898 = vunpack.c.l.b16 %v411
  %v899 = vunpack.c.h.b16 %v411
  %v900 = vpack.c.b16 %v888, %v884
  %v901 = vpack.c.b16 %v889, %v885
  %v902 = vpack.c.b16 %v890, %v886
  %v903 = vpack.c.b16 %v891, %v887
  %v904 = vpack.c.b16 %v896, %v892
  %v905 = vpack.c.b16 %v897, %v893
  %v906 = vpack.c.b16 %v898, %v894
  %v907 = vpack.c.b16 %v899, %v895
  %v924 = vunpack.c.l.b16 %v412
  %v925 = vunpack.c.h.b16 %v412
  %v926 = vunpack.c.l.b16 %v413
  %v927 = vunpack.c.h.b16 %v413
  %v928 = vunpack.c.l.b16 %v414
  %v929 = vunpack.c.h.b16 %v414
  %v930 = vunpack.c.l.b16 %v415
  %v931 = vunpack.c.h.b16 %v415
  %v932 = vunpack.c.l.b16 %v416
  %v933 = vunpack.c.h.b16 %v416
  %v934 = vunpack.c.l.b16 %v417
  %v935 = vunpack.c.h.b16 %v417
  %v936 = vunpack.c.l.b16 %v418
  %v937 = vunpack.c.h.b16 %v418
  %v938 = vunpack.c.l.b16 %v419
  %v939 = vunpack.c.h.b16 %v419
  %v940 = vpack.c.b16 %v928, %v924
  %v941 = vpack.c.b16 %v929, %v925
  %v942 = vpack.c.b16 %v930, %v926
  %v943 = vpack.c.b16 %v931, %v927
  %v944 = vpack.c.b16 %v936, %v932
  %v945 = vpack.c.b16 %v937, %v933
  %v946 = vpack.c.b16 %v938, %v934
  %v947 = vpack.c.b16 %v939, %v935
  %v964 = vunpack.c.l.b16 %v496
  %v965 = vunpack.c.h.b16 %v496
  %v966 = vunpack.c.l.b16 %v497
  %v967 = vunpack.c.h.b16 %v497
  %v968 = vunpack.c.l.b16 %v498
  %v969 = vunpack.c.h.b16 %v498
  %v970 = vunpack.c.l.b16 %v499
  %v971 = vunpack.c.h.b16 %v499
  %v972 = vunpack.c.l.b16 %v500
  %v973 = vunpack.c.h.b16 %v500
  %v974 = vunpack.c.l.b16 %v501
  %v975 = vunpack.c.h.b16 %v501
  %v976 = vunpack.c.l.b16 %v502
  %v977 = vunpack.c.h.b16 %v502
  %v978 = vunpack.c.l.b16 %v503
  %v979 = vunpack.c.h.b16 %v503
  %v980 = vpack.c.b16 %v968, %v964
  %v981 = vpack.c.b16 %v969, %v965
  %v982 = vpack.c.b16 %v970, %v966
  %v983 = vpack.c.b16 %v971, %v967
  %v984 = vpack.c.b16 %v976, %v972
  %v985 = vpack.c.b16 %v977, %v973
  %v986 = vpack.c.b16 %v978, %v974
  %v987 = vpack.c.b16 %v979, %v975
  %v1004 = vunpack.c.l.b16 %v580
  %v1005 = vunpack.c.h.b16 %v580
  %v1006 = vunpack.c.l.b16 %v581
  %v1007 = vunpack.c.h.b16 %v581
  %v1008 = vunpack.c.l.b16 %v582
  %v1009 = vunpack.c.h.b16 %v582
  %v1010 = vunpack.c.l.b16 %v583
  %v1011 = vunpack.c.h.b16 %v583
  %v1012 = vunpack.c.l.b16 %v584
  %v1013 = vunpack.c.h.b16 %v584
  %v1014 = vunpack.c.l.b16 %v585
  %v1015 = vunpack.c.h.b16 %v585
  %v1016 = vunpack.c.l.b16 %v586
  %v1017 = vunpack.c.h.b16 %v586
  %v1018 = vunpack.c.l.b16 %v587
  %v1019 = vunpack.c.h.b16 %v587
  %v1020 = vpack.c.b16 %v1008, %v1004
  %v1021 = vpack.c.b16 %v1009, %v1005
  %v1022 = vpack.c.b16 %v1010, %v1006
  %v1023 = vpack.c.b16 %v1011, %v1007
  %v1024 = vpack.c.b16 %v1016, %v1012
  %v1025 = vpack.c.b16 %v1017, %v1013
  %v1026 = vpack.c.b16 %v1018, %v1014
  %v1027 = vpack.c.b16 %v1019, %v1015
  %v1044 = vunpack.c.l.b16 %v664
  %v1045 = vunpack.c.h.b16 %v664
  %v1046 = vunpack.c.l.b16 %v665
  %v1047 = vunpack.c.h.b16 %v665
  %v1048 = vunpack.c.l.b16 %v666
  %v1049 = vunpack.c.h.b16 %v666
  %v1050 = vunpack.c.l.b16 %v667
  %v1051 = vunpack.c.h.b16 %v667
  %v1052 = vunpack.c.l.b16 %v668
  %v1053 = vunpack.c.h.b16 %v668
  %v1054 = vunpack.c.l.b16 %v669
  %v1055 = vunpack.c.h.b16 %v669
  %v1056 = vunpack.c.l.b16 %v670
  %v1057 = vunpack.c.h.b16 %v670
  %v1058 = vunpack.c.l.b16 %v671
  %v1059 = vunpack.c.h.b16 %v671
  %v1060 = vpack.c.b16 %v1048, %v1044
  %v1061 = vpack.c.b16 %v1049, %v1045
  %v1062 = vpack.c.b16 %v1050, %v1046
  %v1063 = vpack.c.b16 %v1051, %v1047
  %v1064 = vpack.c.b16 %v1056, %v1052
  %v1065 = vpack.c.b16 %v1057, %v1053
  %v1066 = vpack.c.b16 %v1058, %v1054
  %v1067 = vpack.c.b16 %v1059, %v1055
  %v1084 = vunpack.c.l.b16 %v748
  %v1085 = vunpack.c.h.b16 %v748
  %v1086 = vunpack.c.l.b16 %v749
  %v1087 = vunpack.c.h.b16 %v749
  %v1088 = vunpack.c.l.b16 %v750
  %v1089 = vunpack.c.h.b16 %v750
  %v1090 = vunpack.c.l.b16 %v751
  %v1091 = vunpack.c.h.b16 %v751
  %v1092 = vunpack.c.l.b16 %v752
  %v1093 = vunpack.c.h.b16 %v752
  %v1094 = vunpack.c.l.b16 %v753
  %v1095 = vunpack.c.h.b16 %v753
  %v1096 = vunpack.c.l.b16 %v754
  %v1097 = vunpack.c.h.b16 %v754
  %v1098 = vunpack.c.l.b16 %v755
  %v1099 = vunpack.c.h.b16 %v755
  %v1100 = vpack.c.b16 %v1088, %v1084
  %v1101 = vpack.c.b16 %v1089, %v1085
  %v1102 = vpack.c.b16 %v1090, %v1086
  %v1103 = vpack.c.b16 %v1091, %v1087
  %v1104 = vpack.c.b16 %v1096, %v1092
  %v1105 = vpack.c.b16 %v1097, %v1093
  %v1106 = vpack.c.b16 %v1098, %v1094
  %v1107 = vpack.c.b16 %v1099, %v1095
  %v1116 = vld [vmem:[%s2] sm:$0xff]
  %v1117 = vld [vmem:[%s2 + $0x8] sm:$0xf]
  %v1118 = vld [vmem:[%s2 + $0xc] sm:$0xff]
  %v1119 = vld [vmem:[%s2 + $0x14] sm:$0xf]
  %v1120 = vld [vmem:[%s2 + $0x18] sm:$0xff]
  %v1121 = vld [vmem:[%s2 + $0x20] sm:$0xf]
  %v1122 = vld [vmem:[%s2 + $0x24] sm:$0xff]
  %v1123 = vld [vmem:[%s2 + $0x2c] sm:$0xf]
  %v1124 = vld [vmem:[%s3] sm:$0xff]
  %v1125 = vld [vmem:[%s3 + $0x8] sm:$0xff]
  %v1126 = vld [vmem:[%s3 + $0x10] sm:$0xff]
  %v1127 = vld [vmem:[%s3 + $0x18] sm:$0xff]
  %1129 = vset.pattern.permute.xlu0 0
  %1130 = vperm.xlu0 %1129, %v1124
  %v1131 = vpop.permute.xlu0 %1130
  %1134 = vset.pattern.permute.xlu0 0
  %1135 = vperm.xlu0 %1134, %v1125
  %v1136 = vpop.permute.xlu0 %1135
  %1139 = vset.pattern.permute.xlu0 0
  %1140 = vperm.xlu0 %1139, %v1126
  %v1141 = vpop.permute.xlu0 %1140
  %1144 = vset.pattern.permute.xlu0 0
  %1145 = vperm.xlu0 %1144, %v1127
  %v1146 = vpop.permute.xlu0 %1145
  %v1156 = vunpack.c.l.b16 %v1116
  %v1157 = vunpack.c.h.b16 %v1116
  %v1158 = vunpack.c.l.b16 %v1117
  %v1159 = vunpack.c.l.b16 %v1118
  %v1160 = vunpack.c.h.b16 %v1118
  %v1161 = vunpack.c.l.b16 %v1119
  %v1162 = vunpack.c.l.b16 %v1120
  %v1163 = vunpack.c.h.b16 %v1120
  %v1164 = vunpack.c.l.b16 %v1121
  %v1165 = vunpack.c.l.b16 %v1122
  %v1166 = vunpack.c.h.b16 %v1122
  %v1167 = vunpack.c.l.b16 %v1123
  %v1168 = vpack.c.b16 %v1159, %v1156
  %v1169 = vpack.c.b16 %v1160, %v1157
  %v1170 = vpack.c.b16 %v1161, %v1158
  %v1171 = vpack.c.b16 %v1165, %v1162
  %v1172 = vpack.c.b16 %v1166, %v1163
  %v1173 = vpack.c.b16 %v1167, %v1164
  %vm1178 = vcmask 261120
  %v1180 = vsel %vm1178, %v1170, 0
  %v1183 = vsel %vm1178, %v1173, 0
  %1185 = vmatpush.bf16.msra.mxu0 %v904
  %1186 = vmatpush.bf16.msra.mxu0 %v900
  %1187 = vmatpush.bf16.msra.mxu0 %v864
  %1188 = vmatpush.bf16.msra.mxu0 %v860
  %1189 = vmatpush.bf16.msra.mxu0 %v824
  %1190 = vmatpush.bf16.msra.mxu0 %v820
  %1191 = vmatpush.bf16.msra.mxu0 %v784
  %1192 = vmatpush.bf16.msra.mxu0 %v780
  %1193 = vmatmul.bf16.gmra.mxu0 %v1168
  %v1194 = vpop.f32.mrf.mxu0
  %v1195 = vadd.f32 %v1131, %v1194
  %v1196 = vpop.f32.mrf.mxu0
  %v1197 = vadd.f32 %v1136, %v1196
  %1198 = vmatmul.bf16.gmra.mxu0 %v1171
  %v1199 = vpop.f32.mrf.mxu0
  %v1200 = vadd.f32 %v1141, %v1199
  %v1201 = vpop.f32.mrf.mxu0
  %v1202 = vadd.f32 %v1146, %v1201
  %1203 = vdwg.mxu0
  %1204 = vmatpush.bf16.msra.mxu0 %v1064
  %1205 = vmatpush.bf16.msra.mxu0 %v1060
  %1206 = vmatpush.bf16.msra.mxu0 %v1024
  %1207 = vmatpush.bf16.msra.mxu0 %v1020
  %1208 = vmatpush.bf16.msra.mxu0 %v984
  %1209 = vmatpush.bf16.msra.mxu0 %v980
  %1210 = vmatpush.bf16.msra.mxu0 %v944
  %1211 = vmatpush.bf16.msra.mxu0 %v940
  %1212 = vmatmul.bf16.gmra.mxu0 %v1169
  %v1213 = vpop.f32.mrf.mxu0
  %v1214 = vadd.f32 %v1195, %v1213
  %v1215 = vpop.f32.mrf.mxu0
  %v1216 = vadd.f32 %v1197, %v1215
  %1217 = vmatmul.bf16.gmra.mxu0 %v1172
  %v1218 = vpop.f32.mrf.mxu0
  %v1219 = vadd.f32 %v1200, %v1218
  %v1220 = vpop.f32.mrf.mxu0
  %v1221 = vadd.f32 %v1202, %v1220
  %1222 = vdwg.mxu0
  %1223 = vmatpush.bf16.msra.mxu0 0
  %1224 = vmatpush.bf16.msra.mxu0 0
  %1225 = vmatpush.bf16.msra.mxu0 0
  %1226 = vmatpush.bf16.msra.mxu0 0
  %1227 = vmatpush.bf16.msra.mxu0 0
  %1228 = vmatpush.bf16.msra.mxu0 0
  %1229 = vmatpush.bf16.msra.mxu0 %v1104
  %1230 = vmatpush.bf16.msra.mxu0 %v1100
  %1231 = vmatmul.bf16.gmra.mxu0 %v1180
  %v1232 = vpop.f32.mrf.mxu0
  %v1233 = vadd.f32 %v1214, %v1232
  %v1234 = vpop.f32.mrf.mxu0
  %v1235 = vadd.f32 %v1216, %v1234
  %1236 = vmatmul.bf16.gmra.mxu0 %v1183
  %v1237 = vpop.f32.mrf.mxu0
  %v1238 = vadd.f32 %v1219, %v1237
  %v1239 = vpop.f32.mrf.mxu0
  %v1240 = vadd.f32 %v1221, %v1239
  %1241 = vdwg.mxu0
  %1242 = vmatpush.bf16.msra.mxu0 %v905
  %1243 = vmatpush.bf16.msra.mxu0 %v901
  %1244 = vmatpush.bf16.msra.mxu0 %v865
  %1245 = vmatpush.bf16.msra.mxu0 %v861
  %1246 = vmatpush.bf16.msra.mxu0 %v825
  %1247 = vmatpush.bf16.msra.mxu0 %v821
  %1248 = vmatpush.bf16.msra.mxu0 %v785
  %1249 = vmatpush.bf16.msra.mxu0 %v781
  %1250 = vmatmul.bf16.gmra.mxu0 %v1168
  %v1251 = vpop.f32.mrf.mxu0
  %v1252 = vadd.f32 %v1131, %v1251
  %v1253 = vpop.f32.mrf.mxu0
  %v1254 = vadd.f32 %v1136, %v1253
  %1255 = vmatmul.bf16.gmra.mxu0 %v1171
  %v1256 = vpop.f32.mrf.mxu0
  %v1257 = vadd.f32 %v1141, %v1256
  %v1258 = vpop.f32.mrf.mxu0
  %v1259 = vadd.f32 %v1146, %v1258
  %1260 = vdwg.mxu0
  %1261 = vmatpush.bf16.msra.mxu0 %v1065
  %1262 = vmatpush.bf16.msra.mxu0 %v1061
  %1263 = vmatpush.bf16.msra.mxu0 %v1025
  %1264 = vmatpush.bf16.msra.mxu0 %v1021
  %1265 = vmatpush.bf16.msra.mxu0 %v985
  %1266 = vmatpush.bf16.msra.mxu0 %v981
  %1267 = vmatpush.bf16.msra.mxu0 %v945
  %1268 = vmatpush.bf16.msra.mxu0 %v941
  %1269 = vmatmul.bf16.gmra.mxu0 %v1169
  %v1270 = vpop.f32.mrf.mxu0
  %v1271 = vadd.f32 %v1252, %v1270
  %v1272 = vpop.f32.mrf.mxu0
  %v1273 = vadd.f32 %v1254, %v1272
  %1274 = vmatmul.bf16.gmra.mxu0 %v1172
  %v1275 = vpop.f32.mrf.mxu0
  %v1276 = vadd.f32 %v1257, %v1275
  %v1277 = vpop.f32.mrf.mxu0
  %v1278 = vadd.f32 %v1259, %v1277
  %1279 = vdwg.mxu0
  %1280 = vmatpush.bf16.msra.mxu0 0
  %1281 = vmatpush.bf16.msra.mxu0 0
  %1282 = vmatpush.bf16.msra.mxu0 0
  %1283 = vmatpush.bf16.msra.mxu0 0
  %1284 = vmatpush.bf16.msra.mxu0 0
  %1285 = vmatpush.bf16.msra.mxu0 0
  %1286 = vmatpush.bf16.msra.mxu0 %v1105
  %1287 = vmatpush.bf16.msra.mxu0 %v1101
  %1288 = vmatmul.bf16.gmra.mxu0 %v1180
  %v1289 = vpop.f32.mrf.mxu0
  %v1290 = vadd.f32 %v1271, %v1289
  %v1291 = vpop.f32.mrf.mxu0
  %v1292 = vadd.f32 %v1273, %v1291
  %1293 = vmatmul.bf16.gmra.mxu0 %v1183
  %v1294 = vpop.f32.mrf.mxu0
  %v1295 = vadd.f32 %v1276, %v1294
  %v1296 = vpop.f32.mrf.mxu0
  %v1297 = vadd.f32 %v1278, %v1296
  %1298 = vdwg.mxu0
  %1299 = vmatpush.bf16.msra.mxu0 %v906
  %1300 = vmatpush.bf16.msra.mxu0 %v902
  %1301 = vmatpush.bf16.msra.mxu0 %v866
  %1302 = vmatpush.bf16.msra.mxu0 %v862
  %1303 = vmatpush.bf16.msra.mxu0 %v826
  %1304 = vmatpush.bf16.msra.mxu0 %v822
  %1305 = vmatpush.bf16.msra.mxu0 %v786
  %1306 = vmatpush.bf16.msra.mxu0 %v782
  %1307 = vmatmul.bf16.gmra.mxu0 %v1168
  %v1308 = vpop.f32.mrf.mxu0
  %v1309 = vadd.f32 %v1131, %v1308
  %v1310 = vpop.f32.mrf.mxu0
  %v1311 = vadd.f32 %v1136, %v1310
  %1312 = vmatmul.bf16.gmra.mxu0 %v1171
  %v1313 = vpop.f32.mrf.mxu0
  %v1314 = vadd.f32 %v1141, %v1313
  %v1315 = vpop.f32.mrf.mxu0
  %v1316 = vadd.f32 %v1146, %v1315
  %1317 = vdwg.mxu0
  %1318 = vmatpush.bf16.msra.mxu0 %v1066
  %1319 = vmatpush.bf16.msra.mxu0 %v1062
  %1320 = vmatpush.bf16.msra.mxu0 %v1026
  %1321 = vmatpush.bf16.msra.mxu0 %v1022
  %1322 = vmatpush.bf16.msra.mxu0 %v986
  %1323 = vmatpush.bf16.msra.mxu0 %v982
  %1324 = vmatpush.bf16.msra.mxu0 %v946
  %1325 = vmatpush.bf16.msra.mxu0 %v942
  %1326 = vmatmul.bf16.gmra.mxu0 %v1169
  %v1327 = vpop.f32.mrf.mxu0
  %v1328 = vadd.f32 %v1309, %v1327
  %v1329 = vpop.f32.mrf.mxu0
  %v1330 = vadd.f32 %v1311, %v1329
  %1331 = vmatmul.bf16.gmra.mxu0 %v1172
  %v1332 = vpop.f32.mrf.mxu0
  %v1333 = vadd.f32 %v1314, %v1332
  %v1334 = vpop.f32.mrf.mxu0
  %v1335 = vadd.f32 %v1316, %v1334
  %1336 = vdwg.mxu0
  %1337 = vmatpush.bf16.msra.mxu0 0
  %1338 = vmatpush.bf16.msra.mxu0 0
  %1339 = vmatpush.bf16.msra.mxu0 0
  %1340 = vmatpush.bf16.msra.mxu0 0
  %1341 = vmatpush.bf16.msra.mxu0 0
  %1342 = vmatpush.bf16.msra.mxu0 0
  %1343 = vmatpush.bf16.msra.mxu0 %v1106
  %1344 = vmatpush.bf16.msra.mxu0 %v1102
  %1345 = vmatmul.bf16.gmra.mxu0 %v1180
  %v1346 = vpop.f32.mrf.mxu0
  %v1347 = vadd.f32 %v1328, %v1346
  %v1348 = vpop.f32.mrf.mxu0
  %v1349 = vadd.f32 %v1330, %v1348
  %1350 = vmatmul.bf16.gmra.mxu0 %v1183
  %v1351 = vpop.f32.mrf.mxu0
  %v1352 = vadd.f32 %v1333, %v1351
  %v1353 = vpop.f32.mrf.mxu0
  %v1354 = vadd.f32 %v1335, %v1353
  %1355 = vdwg.mxu0
  %1356 = vmatpush.bf16.msra.mxu0 %v907
  %1357 = vmatpush.bf16.msra.mxu0 %v903
  %1358 = vmatpush.bf16.msra.mxu0 %v867
  %1359 = vmatpush.bf16.msra.mxu0 %v863
  %1360 = vmatpush.bf16.msra.mxu0 %v827
  %1361 = vmatpush.bf16.msra.mxu0 %v823
  %1362 = vmatpush.bf16.msra.mxu0 %v787
  %1363 = vmatpush.bf16.msra.mxu0 %v783
  %1364 = vmatmul.bf16.gmra.mxu0 %v1168
  %v1365 = vpop.f32.mrf.mxu0
  %v1366 = vadd.f32 %v1131, %v1365
  %v1367 = vpop.f32.mrf.mxu0
  %v1368 = vadd.f32 %v1136, %v1367
  %1369 = vmatmul.bf16.gmra.mxu0 %v1171
  %v1370 = vpop.f32.mrf.mxu0
  %v1371 = vadd.f32 %v1141, %v1370
  %v1372 = vpop.f32.mrf.mxu0
  %v1373 = vadd.f32 %v1146, %v1372
  %1374 = vdwg.mxu0
  %1375 = vmatpush.bf16.msra.mxu0 %v1067
  %1376 = vmatpush.bf16.msra.mxu0 %v1063
  %1377 = vmatpush.bf16.msra.mxu0 %v1027
  %1378 = vmatpush.bf16.msra.mxu0 %v1023
  %1379 = vmatpush.bf16.msra.mxu0 %v987
  %1380 = vmatpush.bf16.msra.mxu0 %v983
  %1381 = vmatpush.bf16.msra.mxu0 %v947
  %1382 = vmatpush.bf16.msra.mxu0 %v943
  %1383 = vmatmul.bf16.gmra.mxu0 %v1169
  %v1384 = vpop.f32.mrf.mxu0
  %v1385 = vadd.f32 %v1366, %v1384
  %v1386 = vpop.f32.mrf.mxu0
  %v1387 = vadd.f32 %v1368, %v1386
  %1388 = vmatmul.bf16.gmra.mxu0 %v1172
  %v1389 = vpop.f32.mrf.mxu0
  %v1390 = vadd.f32 %v1371, %v1389
  %v1391 = vpop.f32.mrf.mxu0
  %v1392 = vadd.f32 %v1373, %v1391
  %1393 = vdwg.mxu0
  %1394 = vmatpush.bf16.msra.mxu0 0
  %1395 = vmatpush.bf16.msra.mxu0 0
  %1396 = vmatpush.bf16.msra.mxu0 0
  %1397 = vmatpush.bf16.msra.mxu0 0
  %1398 = vmatpush.bf16.msra.mxu0 0
  %1399 = vmatpush.bf16.msra.mxu0 0
  %1400 = vmatpush.bf16.msra.mxu0 %v1107
  %1401 = vmatpush.bf16.msra.mxu0 %v1103
  %1402 = vmatmul.bf16.gmra.mxu0 %v1180
  %v1403 = vpop.f32.mrf.mxu0
  %v1404 = vadd.f32 %v1385, %v1403
  %v1405 = vpop.f32.mrf.mxu0
  %v1406 = vadd.f32 %v1387, %v1405
  %1407 = vmatmul.bf16.gmra.mxu0 %v1183
  %v1408 = vpop.f32.mrf.mxu0
  %v1409 = vadd.f32 %v1390, %v1408
  %v1410 = vpop.f32.mrf.mxu0
  %v1411 = vadd.f32 %v1392, %v1410
  %1412 = vdwg.mxu0
  %v1413 = vmax.f32 %v1233, 0.0
  %v1414 = vmax.f32 %v1290, 0.0
  %v1415 = vmax.f32 %v1347, 0.0
  %v1416 = vmax.f32 %v1404, 0.0
  %v1417 = vmax.f32 %v1235, 0.0
  %v1418 = vmax.f32 %v1292, 0.0
  %v1419 = vmax.f32 %v1349, 0.0
  %v1420 = vmax.f32 %v1406, 0.0
  %v1421 = vmax.f32 %v1238, 0.0
  %v1422 = vmax.f32 %v1295, 0.0
  %v1423 = vmax.f32 %v1352, 0.0
  %v1424 = vmax.f32 %v1409, 0.0
  %v1425 = vmax.f32 %v1240, 0.0
  %v1426 = vmax.f32 %v1297, 0.0
  %v1427 = vmax.f32 %v1354, 0.0
  %v1428 = vmax.f32 %v1411, 0.0
  %1429 = vrot.lane.b32.xlu0 %v1413, 17
  %v1430 = vpop.permute.xlu0 %1429
  %1431 = vrot.lane.b32.xlu0 %v1417, 17
  %v1432 = vpop.permute.xlu0 %1431
  %1433 = vrot.lane.b32.xlu0 %v1421, 17
  %v1434 = vpop.permute.xlu0 %1433
  %1435 = vrot.lane.b32.xlu0 %v1425, 17
  %v1436 = vpop.permute.xlu0 %1435
  %1437 = vrot.lane.b32.xlu0 %v1414, 17
  %v1438 = vpop.permute.xlu0 %1437
  %1439 = vrot.lane.b32.xlu0 %v1418, 17
  %v1440 = vpop.permute.xlu0 %1439
  %1441 = vrot.lane.b32.xlu0 %v1422, 17
  %v1442 = vpop.permute.xlu0 %1441
  %1443 = vrot.lane.b32.xlu0 %v1426, 17
  %v1444 = vpop.permute.xlu0 %1443
  %1445 = vrot.lane.b32.xlu0 %v1415, 17
  %v1446 = vpop.permute.xlu0 %1445
  %1447 = vrot.lane.b32.xlu0 %v1419, 17
  %v1448 = vpop.permute.xlu0 %1447
  %1449 = vrot.lane.b32.xlu0 %v1423, 17
  %v1450 = vpop.permute.xlu0 %1449
  %1451 = vrot.lane.b32.xlu0 %v1427, 17
  %v1452 = vpop.permute.xlu0 %1451
  %1453 = vrot.lane.b32.xlu0 %v1416, 17
  %v1454 = vpop.permute.xlu0 %1453
  %1455 = vrot.lane.b32.xlu0 %v1420, 17
  %v1456 = vpop.permute.xlu0 %1455
  %1457 = vrot.lane.b32.xlu0 %v1424, 17
  %v1458 = vpop.permute.xlu0 %1457
  %1459 = vrot.lane.b32.xlu0 %v1428, 17
  %v1460 = vpop.permute.xlu0 %1459
  %v1461 = vsel %vm109, %v1446, %v1454
  %v1462 = vsel %vm109, %v1448, %v1456
  %v1463 = vsel %vm109, %v1450, %v1458
  %v1464 = vsel %vm109, %v1452, %v1460
  %v1465 = vsel %vm109, %v1438, %v1446
  %v1466 = vsel %vm109, %v1440, %v1448
  %v1467 = vsel %vm109, %v1442, %v1450
  %v1468 = vsel %vm109, %v1444, %v1452
  %v1469 = vsel %vm109, %v1430, %v1438
  %v1470 = vsel %vm109, %v1432, %v1440
  %v1471 = vsel %vm109, %v1434, %v1442
  %v1472 = vsel %vm109, %v1436, %v1444
  %v1473 = vsel %vm109, %v1454, %v1430
  %v1474 = vsel %vm109, %v1456, %v1432
  %v1475 = vsel %vm109, %v1458, %v1434
  %v1476 = vsel %vm109, %v1460, %v1436
  %v1477 = vmul.f32 %v1473, %v128
  %v1478 = vmul.f32 %v1469, %v129
  %v1479 = vmul.f32 %v1465, %v130
  %v1480 = vmul.f32 %v1461, %v131
  %v1481 = vmul.f32 %v1474, %v128
  %v1482 = vmul.f32 %v1470, %v129
  %v1483 = vmul.f32 %v1466, %v130
  %v1484 = vmul.f32 %v1462, %v131
  %v1485 = vmul.f32 %v1475, %v128
  %v1486 = vmul.f32 %v1471, %v129
  %v1487 = vmul.f32 %v1467, %v130
  %v1488 = vmul.f32 %v1463, %v131
  %v1489 = vmul.f32 %v1476, %v128
  %v1490 = vmul.f32 %v1472, %v129
  %v1491 = vmul.f32 %v1468, %v130
  %v1492 = vmul.f32 %v1464, %v131
  %v1493 = vpack.c.bf16 %v1478, %v1477
  %v1494 = vpack.c.bf16 %v1480, %v1479
  %v1495 = vpack.c.bf16 %v1482, %v1481
  %v1496 = vpack.c.bf16 %v1484, %v1483
  %v1497 = vpack.c.bf16 %v1486, %v1485
  %v1498 = vpack.c.bf16 %v1488, %v1487
  %v1499 = vpack.c.bf16 %v1490, %v1489
  %v1500 = vpack.c.bf16 %v1492, %v1491
  %1501 = vrot.lane.b32.xlu0 %v1413, 16
  %v1502 = vpop.permute.xlu0 %1501
  %1503 = vrot.lane.b32.xlu0 %v1417, 16
  %v1504 = vpop.permute.xlu0 %1503
  %1505 = vrot.lane.b32.xlu0 %v1421, 16
  %v1506 = vpop.permute.xlu0 %1505
  %1507 = vrot.lane.b32.xlu0 %v1425, 16
  %v1508 = vpop.permute.xlu0 %1507
  %1509 = vrot.lane.b32.xlu0 %v1414, 16
  %v1510 = vpop.permute.xlu0 %1509
  %1511 = vrot.lane.b32.xlu0 %v1418, 16
  %v1512 = vpop.permute.xlu0 %1511
  %1513 = vrot.lane.b32.xlu0 %v1422, 16
  %v1514 = vpop.permute.xlu0 %1513
  %1515 = vrot.lane.b32.xlu0 %v1426, 16
  %v1516 = vpop.permute.xlu0 %1515
  %1517 = vrot.lane.b32.xlu0 %v1415, 16
  %v1518 = vpop.permute.xlu0 %1517
  %1519 = vrot.lane.b32.xlu0 %v1419, 16
  %v1520 = vpop.permute.xlu0 %1519
  %1521 = vrot.lane.b32.xlu0 %v1423, 16
  %v1522 = vpop.permute.xlu0 %1521
  %1523 = vrot.lane.b32.xlu0 %v1427, 16
  %v1524 = vpop.permute.xlu0 %1523
  %1525 = vrot.lane.b32.xlu0 %v1416, 16
  %v1526 = vpop.permute.xlu0 %1525
  %1527 = vrot.lane.b32.xlu0 %v1420, 16
  %v1528 = vpop.permute.xlu0 %1527
  %1529 = vrot.lane.b32.xlu0 %v1424, 16
  %v1530 = vpop.permute.xlu0 %1529
  %1531 = vrot.lane.b32.xlu0 %v1428, 16
  %v1532 = vpop.permute.xlu0 %1531
  %v1533 = vsel %vm192, %v1518, %v1526
  %v1534 = vsel %vm192, %v1520, %v1528
  %v1535 = vsel %vm192, %v1522, %v1530
  %v1536 = vsel %vm192, %v1524, %v1532
  %v1537 = vsel %vm192, %v1510, %v1518
  %v1538 = vsel %vm192, %v1512, %v1520
  %v1539 = vsel %vm192, %v1514, %v1522
  %v1540 = vsel %vm192, %v1516, %v1524
  %v1541 = vsel %vm192, %v1502, %v1510
  %v1542 = vsel %vm192, %v1504, %v1512
  %v1543 = vsel %vm192, %v1506, %v1514
  %v1544 = vsel %vm192, %v1508, %v1516
  %v1545 = vsel %vm192, %v1526, %v1502
  %v1546 = vsel %vm192, %v1528, %v1504
  %v1547 = vsel %vm192, %v1530, %v1506
  %v1548 = vsel %vm192, %v1532, %v1508
  %v1549 = vmul.f32 %v1545, %v212
  %v1550 = vmul.f32 %v1541, %v213
  %v1551 = vmul.f32 %v1537, %v214
  %v1552 = vmul.f32 %v1533, %v215
  %v1553 = vmul.f32 %v1546, %v212
  %v1554 = vmul.f32 %v1542, %v213
  %v1555 = vmul.f32 %v1538, %v214
  %v1556 = vmul.f32 %v1534, %v215
  %v1557 = vmul.f32 %v1547, %v212
  %v1558 = vmul.f32 %v1543, %v213
  %v1559 = vmul.f32 %v1539, %v214
  %v1560 = vmul.f32 %v1535, %v215
  %v1561 = vmul.f32 %v1548, %v212
  %v1562 = vmul.f32 %v1544, %v213
  %v1563 = vmul.f32 %v1540, %v214
  %v1564 = vmul.f32 %v1536, %v215
  %v1565 = vpack.c.bf16 %v1550, %v1549
  %v1566 = vpack.c.bf16 %v1552, %v1551
  %v1567 = vpack.c.bf16 %v1554, %v1553
  %v1568 = vpack.c.bf16 %v1556, %v1555
  %v1569 = vpack.c.bf16 %v1558, %v1557
  %v1570 = vpack.c.bf16 %v1560, %v1559
  %v1571 = vpack.c.bf16 %v1562, %v1561
  %v1572 = vpack.c.bf16 %v1564, %v1563
  %1573 = vrot.lane.b32.xlu0 %v1413, 15
  %v1574 = vpop.permute.xlu0 %1573
  %1575 = vrot.lane.b32.xlu0 %v1417, 15
  %v1576 = vpop.permute.xlu0 %1575
  %1577 = vrot.lane.b32.xlu0 %v1421, 15
  %v1578 = vpop.permute.xlu0 %1577
  %1579 = vrot.lane.b32.xlu0 %v1425, 15
  %v1580 = vpop.permute.xlu0 %1579
  %1581 = vrot.lane.b32.xlu0 %v1414, 15
  %v1582 = vpop.permute.xlu0 %1581
  %1583 = vrot.lane.b32.xlu0 %v1418, 15
  %v1584 = vpop.permute.xlu0 %1583
  %1585 = vrot.lane.b32.xlu0 %v1422, 15
  %v1586 = vpop.permute.xlu0 %1585
  %1587 = vrot.lane.b32.xlu0 %v1426, 15
  %v1588 = vpop.permute.xlu0 %1587
  %1589 = vrot.lane.b32.xlu0 %v1415, 15
  %v1590 = vpop.permute.xlu0 %1589
  %1591 = vrot.lane.b32.xlu0 %v1419, 15
  %v1592 = vpop.permute.xlu0 %1591
  %1593 = vrot.lane.b32.xlu0 %v1423, 15
  %v1594 = vpop.permute.xlu0 %1593
  %1595 = vrot.lane.b32.xlu0 %v1427, 15
  %v1596 = vpop.permute.xlu0 %1595
  %1597 = vrot.lane.b32.xlu0 %v1416, 15
  %v1598 = vpop.permute.xlu0 %1597
  %1599 = vrot.lane.b32.xlu0 %v1420, 15
  %v1600 = vpop.permute.xlu0 %1599
  %1601 = vrot.lane.b32.xlu0 %v1424, 15
  %v1602 = vpop.permute.xlu0 %1601
  %1603 = vrot.lane.b32.xlu0 %v1428, 15
  %v1604 = vpop.permute.xlu0 %1603
  %v1605 = vsel %vm276, %v1590, %v1598
  %v1606 = vsel %vm276, %v1592, %v1600
  %v1607 = vsel %vm276, %v1594, %v1602
  %v1608 = vsel %vm276, %v1596, %v1604
  %v1609 = vsel %vm276, %v1582, %v1590
  %v1610 = vsel %vm276, %v1584, %v1592
  %v1611 = vsel %vm276, %v1586, %v1594
  %v1612 = vsel %vm276, %v1588, %v1596
  %v1613 = vsel %vm276, %v1574, %v1582
  %v1614 = vsel %vm276, %v1576, %v1584
  %v1615 = vsel %vm276, %v1578, %v1586
  %v1616 = vsel %vm276, %v1580, %v1588
  %v1617 = vsel %vm276, %v1598, %v1574
  %v1618 = vsel %vm276, %v1600, %v1576
  %v1619 = vsel %vm276, %v1602, %v1578
  %v1620 = vsel %vm276, %v1604, %v1580
  %v1621 = vmul.f32 %v1617, %v296
  %v1622 = vmul.f32 %v1613, %v297
  %v1623 = vmul.f32 %v1609, %v298
  %v1624 = vmul.f32 %v1605, %v299
  %v1625 = vmul.f32 %v1618, %v296
  %v1626 = vmul.f32 %v1614, %v297
  %v1627 = vmul.f32 %v1610, %v298
  %v1628 = vmul.f32 %v1606, %v299
  %v1629 = vmul.f32 %v1619, %v296
  %v1630 = vmul.f32 %v1615, %v297
  %v1631 = vmul.f32 %v1611, %v298
  %v1632 = vmul.f32 %v1607, %v299
  %v1633 = vmul.f32 %v1620, %v296
  %v1634 = vmul.f32 %v1616, %v297
  %v1635 = vmul.f32 %v1612, %v298
  %v1636 = vmul.f32 %v1608, %v299
  %v1637 = vpack.c.bf16 %v1622, %v1621
  %v1638 = vpack.c.bf16 %v1624, %v1623
  %v1639 = vpack.c.bf16 %v1626, %v1625
  %v1640 = vpack.c.bf16 %v1628, %v1627
  %v1641 = vpack.c.bf16 %v1630, %v1629
  %v1642 = vpack.c.bf16 %v1632, %v1631
  %v1643 = vpack.c.bf16 %v1634, %v1633
  %v1644 = vpack.c.bf16 %v1636, %v1635
  %1645 = vrot.lane.b32.xlu0 %v1413, 1
  %v1646 = vpop.permute.xlu0 %1645
  %1647 = vrot.lane.b32.xlu0 %v1417, 1
  %v1648 = vpop.permute.xlu0 %1647
  %1649 = vrot.lane.b32.xlu0 %v1421, 1
  %v1650 = vpop.permute.xlu0 %1649
  %1651 = vrot.lane.b32.xlu0 %v1425, 1
  %v1652 = vpop.permute.xlu0 %1651
  %1653 = vrot.lane.b32.xlu0 %v1414, 1
  %v1654 = vpop.permute.xlu0 %1653
  %1655 = vrot.lane.b32.xlu0 %v1418, 1
  %v1656 = vpop.permute.xlu0 %1655
  %1657 = vrot.lane.b32.xlu0 %v1422, 1
  %v1658 = vpop.permute.xlu0 %1657
  %1659 = vrot.lane.b32.xlu0 %v1426, 1
  %v1660 = vpop.permute.xlu0 %1659
  %1661 = vrot.lane.b32.xlu0 %v1415, 1
  %v1662 = vpop.permute.xlu0 %1661
  %1663 = vrot.lane.b32.xlu0 %v1419, 1
  %v1664 = vpop.permute.xlu0 %1663
  %1665 = vrot.lane.b32.xlu0 %v1423, 1
  %v1666 = vpop.permute.xlu0 %1665
  %1667 = vrot.lane.b32.xlu0 %v1427, 1
  %v1668 = vpop.permute.xlu0 %1667
  %1669 = vrot.lane.b32.xlu0 %v1416, 1
  %v1670 = vpop.permute.xlu0 %1669
  %1671 = vrot.lane.b32.xlu0 %v1420, 1
  %v1672 = vpop.permute.xlu0 %1671
  %1673 = vrot.lane.b32.xlu0 %v1424, 1
  %v1674 = vpop.permute.xlu0 %1673
  %1675 = vrot.lane.b32.xlu0 %v1428, 1
  %v1676 = vpop.permute.xlu0 %1675
  %v1677 = vsel %vm360, %v1662, %v1670
  %v1678 = vsel %vm360, %v1664, %v1672
  %v1679 = vsel %vm360, %v1666, %v1674
  %v1680 = vsel %vm360, %v1668, %v1676
  %v1681 = vsel %vm360, %v1654, %v1662
  %v1682 = vsel %vm360, %v1656, %v1664
  %v1683 = vsel %vm360, %v1658, %v1666
  %v1684 = vsel %vm360, %v1660, %v1668
  %v1685 = vsel %vm360, %v1646, %v1654
  %v1686 = vsel %vm360, %v1648, %v1656
  %v1687 = vsel %vm360, %v1650, %v1658
  %v1688 = vsel %vm360, %v1652, %v1660
  %v1689 = vsel %vm360, %v1670, %v1646
  %v1690 = vsel %vm360, %v1672, %v1648
  %v1691 = vsel %vm360, %v1674, %v1650
  %v1692 = vsel %vm360, %v1676, %v1652
  %v1693 = vmul.f32 %v1689, %v380
  %v1694 = vmul.f32 %v1685, %v381
  %v1695 = vmul.f32 %v1681, %v382
  %v1696 = vmul.f32 %v1677, %v383
  %v1697 = vmul.f32 %v1690, %v380
  %v1698 = vmul.f32 %v1686, %v381
  %v1699 = vmul.f32 %v1682, %v382
  %v1700 = vmul.f32 %v1678, %v383
  %v1701 = vmul.f32 %v1691, %v380
  %v1702 = vmul.f32 %v1687, %v381
  %v1703 = vmul.f32 %v1683, %v382
  %v1704 = vmul.f32 %v1679, %v383
  %v1705 = vmul.f32 %v1692, %v380
  %v1706 = vmul.f32 %v1688, %v381
  %v1707 = vmul.f32 %v1684, %v382
  %v1708 = vmul.f32 %v1680, %v383
  %v1709 = vpack.c.bf16 %v1694, %v1693
  %v1710 = vpack.c.bf16 %v1696, %v1695
  %v1711 = vpack.c.bf16 %v1698, %v1697
  %v1712 = vpack.c.bf16 %v1700, %v1699
  %v1713 = vpack.c.bf16 %v1702, %v1701
  %v1714 = vpack.c.bf16 %v1704, %v1703
  %v1715 = vpack.c.bf16 %v1706, %v1705
  %v1716 = vpack.c.bf16 %v1708, %v1707
  %v1717 = vpack.c.bf16 %v1414, %v1413
  %v1718 = vpack.c.bf16 %v1416, %v1415
  %v1719 = vpack.c.bf16 %v1418, %v1417
  %v1720 = vpack.c.bf16 %v1420, %v1419
  %v1721 = vpack.c.bf16 %v1422, %v1421
  %v1722 = vpack.c.bf16 %v1424, %v1423
  %v1723 = vpack.c.bf16 %v1426, %v1425
  %v1724 = vpack.c.bf16 %v1428, %v1427
  %1725 = vrot.lane.b32.xlu0 %v1413, 127
  %v1726 = vpop.permute.xlu0 %1725
  %1727 = vrot.lane.b32.xlu0 %v1417, 127
  %v1728 = vpop.permute.xlu0 %1727
  %1729 = vrot.lane.b32.xlu0 %v1421, 127
  %v1730 = vpop.permute.xlu0 %1729
  %1731 = vrot.lane.b32.xlu0 %v1425, 127
  %v1732 = vpop.permute.xlu0 %1731
  %1733 = vrot.lane.b32.xlu0 %v1414, 127
  %v1734 = vpop.permute.xlu0 %1733
  %1735 = vrot.lane.b32.xlu0 %v1418, 127
  %v1736 = vpop.permute.xlu0 %1735
  %1737 = vrot.lane.b32.xlu0 %v1422, 127
  %v1738 = vpop.permute.xlu0 %1737
  %1739 = vrot.lane.b32.xlu0 %v1426, 127
  %v1740 = vpop.permute.xlu0 %1739
  %1741 = vrot.lane.b32.xlu0 %v1415, 127
  %v1742 = vpop.permute.xlu0 %1741
  %1743 = vrot.lane.b32.xlu0 %v1419, 127
  %v1744 = vpop.permute.xlu0 %1743
  %1745 = vrot.lane.b32.xlu0 %v1423, 127
  %v1746 = vpop.permute.xlu0 %1745
  %1747 = vrot.lane.b32.xlu0 %v1427, 127
  %v1748 = vpop.permute.xlu0 %1747
  %1749 = vrot.lane.b32.xlu0 %v1416, 127
  %v1750 = vpop.permute.xlu0 %1749
  %1751 = vrot.lane.b32.xlu0 %v1420, 127
  %v1752 = vpop.permute.xlu0 %1751
  %1753 = vrot.lane.b32.xlu0 %v1424, 127
  %v1754 = vpop.permute.xlu0 %1753
  %1755 = vrot.lane.b32.xlu0 %v1428, 127
  %v1756 = vpop.permute.xlu0 %1755
  %v1757 = vsel %vm452, %v1742, %v1750
  %v1758 = vsel %vm452, %v1744, %v1752
  %v1759 = vsel %vm452, %v1746, %v1754
  %v1760 = vsel %vm452, %v1748, %v1756
  %v1761 = vsel %vm452, %v1734, %v1742
  %v1762 = vsel %vm452, %v1736, %v1744
  %v1763 = vsel %vm452, %v1738, %v1746
  %v1764 = vsel %vm452, %v1740, %v1748
  %v1765 = vsel %vm452, %v1726, %v1734
  %v1766 = vsel %vm452, %v1728, %v1736
  %v1767 = vsel %vm452, %v1730, %v1738
  %v1768 = vsel %vm452, %v1732, %v1740
  %v1769 = vsel %vm452, %v1750, %v1726
  %v1770 = vsel %vm452, %v1752, %v1728
  %v1771 = vsel %vm452, %v1754, %v1730
  %v1772 = vsel %vm452, %v1756, %v1732
  %v1773 = vmul.f32 %v1765, %v472
  %v1774 = vmul.f32 %v1761, %v473
  %v1775 = vmul.f32 %v1757, %v474
  %v1776 = vmul.f32 %v1769, %v475
  %v1777 = vmul.f32 %v1766, %v472
  %v1778 = vmul.f32 %v1762, %v473
  %v1779 = vmul.f32 %v1758, %v474
  %v1780 = vmul.f32 %v1770, %v475
  %v1781 = vmul.f32 %v1767, %v472
  %v1782 = vmul.f32 %v1763, %v473
  %v1783 = vmul.f32 %v1759, %v474
  %v1784 = vmul.f32 %v1771, %v475
  %v1785 = vmul.f32 %v1768, %v472
  %v1786 = vmul.f32 %v1764, %v473
  %v1787 = vmul.f32 %v1760, %v474
  %v1788 = vmul.f32 %v1772, %v475
  %v1789 = vpack.c.bf16 %v1774, %v1773
  %v1790 = vpack.c.bf16 %v1776, %v1775
  %v1791 = vpack.c.bf16 %v1778, %v1777
  %v1792 = vpack.c.bf16 %v1780, %v1779
  %v1793 = vpack.c.bf16 %v1782, %v1781
  %v1794 = vpack.c.bf16 %v1784, %v1783
  %v1795 = vpack.c.bf16 %v1786, %v1785
  %v1796 = vpack.c.bf16 %v1788, %v1787
  %1797 = vrot.lane.b32.xlu0 %v1413, 113
  %v1798 = vpop.permute.xlu0 %1797
  %1799 = vrot.lane.b32.xlu0 %v1417, 113
  %v1800 = vpop.permute.xlu0 %1799
  %1801 = vrot.lane.b32.xlu0 %v1421, 113
  %v1802 = vpop.permute.xlu0 %1801
  %1803 = vrot.lane.b32.xlu0 %v1425, 113
  %v1804 = vpop.permute.xlu0 %1803
  %1805 = vrot.lane.b32.xlu0 %v1414, 113
  %v1806 = vpop.permute.xlu0 %1805
  %1807 = vrot.lane.b32.xlu0 %v1418, 113
  %v1808 = vpop.permute.xlu0 %1807
  %1809 = vrot.lane.b32.xlu0 %v1422, 113
  %v1810 = vpop.permute.xlu0 %1809
  %1811 = vrot.lane.b32.xlu0 %v1426, 113
  %v1812 = vpop.permute.xlu0 %1811
  %1813 = vrot.lane.b32.xlu0 %v1415, 113
  %v1814 = vpop.permute.xlu0 %1813
  %1815 = vrot.lane.b32.xlu0 %v1419, 113
  %v1816 = vpop.permute.xlu0 %1815
  %1817 = vrot.lane.b32.xlu0 %v1423, 113
  %v1818 = vpop.permute.xlu0 %1817
  %1819 = vrot.lane.b32.xlu0 %v1427, 113
  %v1820 = vpop.permute.xlu0 %1819
  %1821 = vrot.lane.b32.xlu0 %v1416, 113
  %v1822 = vpop.permute.xlu0 %1821
  %1823 = vrot.lane.b32.xlu0 %v1420, 113
  %v1824 = vpop.permute.xlu0 %1823
  %1825 = vrot.lane.b32.xlu0 %v1424, 113
  %v1826 = vpop.permute.xlu0 %1825
  %1827 = vrot.lane.b32.xlu0 %v1428, 113
  %v1828 = vpop.permute.xlu0 %1827
  %v1829 = vsel %vm536, %v1814, %v1822
  %v1830 = vsel %vm536, %v1816, %v1824
  %v1831 = vsel %vm536, %v1818, %v1826
  %v1832 = vsel %vm536, %v1820, %v1828
  %v1833 = vsel %vm536, %v1806, %v1814
  %v1834 = vsel %vm536, %v1808, %v1816
  %v1835 = vsel %vm536, %v1810, %v1818
  %v1836 = vsel %vm536, %v1812, %v1820
  %v1837 = vsel %vm536, %v1798, %v1806
  %v1838 = vsel %vm536, %v1800, %v1808
  %v1839 = vsel %vm536, %v1802, %v1810
  %v1840 = vsel %vm536, %v1804, %v1812
  %v1841 = vsel %vm536, %v1822, %v1798
  %v1842 = vsel %vm536, %v1824, %v1800
  %v1843 = vsel %vm536, %v1826, %v1802
  %v1844 = vsel %vm536, %v1828, %v1804
  %v1845 = vmul.f32 %v1837, %v556
  %v1846 = vmul.f32 %v1833, %v557
  %v1847 = vmul.f32 %v1829, %v558
  %v1848 = vmul.f32 %v1841, %v559
  %v1849 = vmul.f32 %v1838, %v556
  %v1850 = vmul.f32 %v1834, %v557
  %v1851 = vmul.f32 %v1830, %v558
  %v1852 = vmul.f32 %v1842, %v559
  %v1853 = vmul.f32 %v1839, %v556
  %v1854 = vmul.f32 %v1835, %v557
  %v1855 = vmul.f32 %v1831, %v558
  %v1856 = vmul.f32 %v1843, %v559
  %v1857 = vmul.f32 %v1840, %v556
  %v1858 = vmul.f32 %v1836, %v557
  %v1859 = vmul.f32 %v1832, %v558
  %v1860 = vmul.f32 %v1844, %v559
  %v1861 = vpack.c.bf16 %v1846, %v1845
  %v1862 = vpack.c.bf16 %v1848, %v1847
  %v1863 = vpack.c.bf16 %v1850, %v1849
  %v1864 = vpack.c.bf16 %v1852, %v1851
  %v1865 = vpack.c.bf16 %v1854, %v1853
  %v1866 = vpack.c.bf16 %v1856, %v1855
  %v1867 = vpack.c.bf16 %v1858, %v1857
  %v1868 = vpack.c.bf16 %v1860, %v1859
  %1869 = vrot.lane.b32.xlu0 %v1413, 112
  %v1870 = vpop.permute.xlu0 %1869
  %1871 = vrot.lane.b32.xlu0 %v1417, 112
  %v1872 = vpop.permute.xlu0 %1871
  %1873 = vrot.lane.b32.xlu0 %v1421, 112
  %v1874 = vpop.permute.xlu0 %1873
  %1875 = vrot.lane.b32.xlu0 %v1425, 112
  %v1876 = vpop.permute.xlu0 %1875
  %1877 = vrot.lane.b32.xlu0 %v1414, 112
  %v1878 = vpop.permute.xlu0 %1877
  %1879 = vrot.lane.b32.xlu0 %v1418, 112
  %v1880 = vpop.permute.xlu0 %1879
  %1881 = vrot.lane.b32.xlu0 %v1422, 112
  %v1882 = vpop.permute.xlu0 %1881
  %1883 = vrot.lane.b32.xlu0 %v1426, 112
  %v1884 = vpop.permute.xlu0 %1883
  %1885 = vrot.lane.b32.xlu0 %v1415, 112
  %v1886 = vpop.permute.xlu0 %1885
  %1887 = vrot.lane.b32.xlu0 %v1419, 112
  %v1888 = vpop.permute.xlu0 %1887
  %1889 = vrot.lane.b32.xlu0 %v1423, 112
  %v1890 = vpop.permute.xlu0 %1889
  %1891 = vrot.lane.b32.xlu0 %v1427, 112
  %v1892 = vpop.permute.xlu0 %1891
  %1893 = vrot.lane.b32.xlu0 %v1416, 112
  %v1894 = vpop.permute.xlu0 %1893
  %1895 = vrot.lane.b32.xlu0 %v1420, 112
  %v1896 = vpop.permute.xlu0 %1895
  %1897 = vrot.lane.b32.xlu0 %v1424, 112
  %v1898 = vpop.permute.xlu0 %1897
  %1899 = vrot.lane.b32.xlu0 %v1428, 112
  %v1900 = vpop.permute.xlu0 %1899
  %v1901 = vsel %vm620, %v1886, %v1894
  %v1902 = vsel %vm620, %v1888, %v1896
  %v1903 = vsel %vm620, %v1890, %v1898
  %v1904 = vsel %vm620, %v1892, %v1900
  %v1905 = vsel %vm620, %v1878, %v1886
  %v1906 = vsel %vm620, %v1880, %v1888
  %v1907 = vsel %vm620, %v1882, %v1890
  %v1908 = vsel %vm620, %v1884, %v1892
  %v1909 = vsel %vm620, %v1870, %v1878
  %v1910 = vsel %vm620, %v1872, %v1880
  %v1911 = vsel %vm620, %v1874, %v1882
  %v1912 = vsel %vm620, %v1876, %v1884
  %v1913 = vsel %vm620, %v1894, %v1870
  %v1914 = vsel %vm620, %v1896, %v1872
  %v1915 = vsel %vm620, %v1898, %v1874
  %v1916 = vsel %vm620, %v1900, %v1876
  %v1917 = vmul.f32 %v1909, %v640
  %v1918 = vmul.f32 %v1905, %v641
  %v1919 = vmul.f32 %v1901, %v642
  %v1920 = vmul.f32 %v1913, %v643
  %v1921 = vmul.f32 %v1910, %v640
  %v1922 = vmul.f32 %v1906, %v641
  %v1923 = vmul.f32 %v1902, %v642
  %v1924 = vmul.f32 %v1914, %v643
  %v1925 = vmul.f32 %v1911, %v640
  %v1926 = vmul.f32 %v1907, %v641
  %v1927 = vmul.f32 %v1903, %v642
  %v1928 = vmul.f32 %v1915, %v643
  %v1929 = vmul.f32 %v1912, %v640
  %v1930 = vmul.f32 %v1908, %v641
  %v1931 = vmul.f32 %v1904, %v642
  %v1932 = vmul.f32 %v1916, %v643
  %v1933 = vpack.c.bf16 %v1918, %v1917
  %v1934 = vpack.c.bf16 %v1920, %v1919
  %v1935 = vpack.c.bf16 %v1922, %v1921
  %v1936 = vpack.c.bf16 %v1924, %v1923
  %v1937 = vpack.c.bf16 %v1926, %v1925
  %v1938 = vpack.c.bf16 %v1928, %v1927
  %v1939 = vpack.c.bf16 %v1930, %v1929
  %v1940 = vpack.c.bf16 %v1932, %v1931
  %1941 = vrot.lane.b32.xlu0 %v1413, 111
  %v1942 = vpop.permute.xlu0 %1941
  %1943 = vrot.lane.b32.xlu0 %v1417, 111
  %v1944 = vpop.permute.xlu0 %1943
  %1945 = vrot.lane.b32.xlu0 %v1421, 111
  %v1946 = vpop.permute.xlu0 %1945
  %1947 = vrot.lane.b32.xlu0 %v1425, 111
  %v1948 = vpop.permute.xlu0 %1947
  %1949 = vrot.lane.b32.xlu0 %v1414, 111
  %v1950 = vpop.permute.xlu0 %1949
  %1951 = vrot.lane.b32.xlu0 %v1418, 111
  %v1952 = vpop.permute.xlu0 %1951
  %1953 = vrot.lane.b32.xlu0 %v1422, 111
  %v1954 = vpop.permute.xlu0 %1953
  %1955 = vrot.lane.b32.xlu0 %v1426, 111
  %v1956 = vpop.permute.xlu0 %1955
  %1957 = vrot.lane.b32.xlu0 %v1415, 111
  %v1958 = vpop.permute.xlu0 %1957
  %1959 = vrot.lane.b32.xlu0 %v1419, 111
  %v1960 = vpop.permute.xlu0 %1959
  %1961 = vrot.lane.b32.xlu0 %v1423, 111
  %v1962 = vpop.permute.xlu0 %1961
  %1963 = vrot.lane.b32.xlu0 %v1427, 111
  %v1964 = vpop.permute.xlu0 %1963
  %1965 = vrot.lane.b32.xlu0 %v1416, 111
  %v1966 = vpop.permute.xlu0 %1965
  %1967 = vrot.lane.b32.xlu0 %v1420, 111
  %v1968 = vpop.permute.xlu0 %1967
  %1969 = vrot.lane.b32.xlu0 %v1424, 111
  %v1970 = vpop.permute.xlu0 %1969
  %1971 = vrot.lane.b32.xlu0 %v1428, 111
  %v1972 = vpop.permute.xlu0 %1971
  %v1973 = vsel %vm704, %v1958, %v1966
  %v1974 = vsel %vm704, %v1960, %v1968
  %v1975 = vsel %vm704, %v1962, %v1970
  %v1976 = vsel %vm704, %v1964, %v1972
  %v1977 = vsel %vm704, %v1950, %v1958
  %v1978 = vsel %vm704, %v1952, %v1960
  %v1979 = vsel %vm704, %v1954, %v1962
  %v1980 = vsel %vm704, %v1956, %v1964
  %v1981 = vsel %vm704, %v1942, %v1950
  %v1982 = vsel %vm704, %v1944, %v1952
  %v1983 = vsel %vm704, %v1946, %v1954
  %v1984 = vsel %vm704, %v1948, %v1956
  %v1985 = vsel %vm704, %v1966, %v1942
  %v1986 = vsel %vm704, %v1968, %v1944
  %v1987 = vsel %vm704, %v1970, %v1946
  %v1988 = vsel %vm704, %v1972, %v1948
  %v1989 = vmul.f32 %v1981, %v724
  %v1990 = vmul.f32 %v1977, %v725
  %v1991 = vmul.f32 %v1973, %v726
  %v1992 = vmul.f32 %v1985, %v727
  %v1993 = vmul.f32 %v1982, %v724
  %v1994 = vmul.f32 %v1978, %v725
  %v1995 = vmul.f32 %v1974, %v726
  %v1996 = vmul.f32 %v1986, %v727
  %v1997 = vmul.f32 %v1983, %v724
  %v1998 = vmul.f32 %v1979, %v725
  %v1999 = vmul.f32 %v1975, %v726
  %v2000 = vmul.f32 %v1987, %v727
  %v2001 = vmul.f32 %v1984, %v724
  %v2002 = vmul.f32 %v1980, %v725
  %v2003 = vmul.f32 %v1976, %v726
  %v2004 = vmul.f32 %v1988, %v727
  %v2005 = vpack.c.bf16 %v1990, %v1989
  %v2006 = vpack.c.bf16 %v1992, %v1991
  %v2007 = vpack.c.bf16 %v1994, %v1993
  %v2008 = vpack.c.bf16 %v1996, %v1995
  %v2009 = vpack.c.bf16 %v1998, %v1997
  %v2010 = vpack.c.bf16 %v2000, %v1999
  %v2011 = vpack.c.bf16 %v2002, %v2001
  %v2012 = vpack.c.bf16 %v2004, %v2003
  %v2021 = vunpack.c.l.b16 %v1493
  %v2022 = vunpack.c.h.b16 %v1493
  %v2023 = vunpack.c.l.b16 %v1494
  %v2024 = vunpack.c.h.b16 %v1494
  %v2025 = vunpack.c.l.b16 %v1495
  %v2026 = vunpack.c.h.b16 %v1495
  %v2027 = vunpack.c.l.b16 %v1496
  %v2028 = vunpack.c.h.b16 %v1496
  %v2029 = vunpack.c.l.b16 %v1497
  %v2030 = vunpack.c.h.b16 %v1497
  %v2031 = vunpack.c.l.b16 %v1498
  %v2032 = vunpack.c.h.b16 %v1498
  %v2033 = vunpack.c.l.b16 %v1499
  %v2034 = vunpack.c.h.b16 %v1499
  %v2035 = vunpack.c.l.b16 %v1500
  %v2036 = vunpack.c.h.b16 %v1500
  %v2037 = vpack.c.b16 %v2025, %v2021
  %v2038 = vpack.c.b16 %v2026, %v2022
  %v2039 = vpack.c.b16 %v2027, %v2023
  %v2040 = vpack.c.b16 %v2028, %v2024
  %v2041 = vpack.c.b16 %v2033, %v2029
  %v2042 = vpack.c.b16 %v2034, %v2030
  %v2043 = vpack.c.b16 %v2035, %v2031
  %v2044 = vpack.c.b16 %v2036, %v2032
  %v2061 = vunpack.c.l.b16 %v1565
  %v2062 = vunpack.c.h.b16 %v1565
  %v2063 = vunpack.c.l.b16 %v1566
  %v2064 = vunpack.c.h.b16 %v1566
  %v2065 = vunpack.c.l.b16 %v1567
  %v2066 = vunpack.c.h.b16 %v1567
  %v2067 = vunpack.c.l.b16 %v1568
  %v2068 = vunpack.c.h.b16 %v1568
  %v2069 = vunpack.c.l.b16 %v1569
  %v2070 = vunpack.c.h.b16 %v1569
  %v2071 = vunpack.c.l.b16 %v1570
  %v2072 = vunpack.c.h.b16 %v1570
  %v2073 = vunpack.c.l.b16 %v1571
  %v2074 = vunpack.c.h.b16 %v1571
  %v2075 = vunpack.c.l.b16 %v1572
  %v2076 = vunpack.c.h.b16 %v1572
  %v2077 = vpack.c.b16 %v2065, %v2061
  %v2078 = vpack.c.b16 %v2066, %v2062
  %v2079 = vpack.c.b16 %v2067, %v2063
  %v2080 = vpack.c.b16 %v2068, %v2064
  %v2081 = vpack.c.b16 %v2073, %v2069
  %v2082 = vpack.c.b16 %v2074, %v2070
  %v2083 = vpack.c.b16 %v2075, %v2071
  %v2084 = vpack.c.b16 %v2076, %v2072
  %v2101 = vunpack.c.l.b16 %v1637
  %v2102 = vunpack.c.h.b16 %v1637
  %v2103 = vunpack.c.l.b16 %v1638
  %v2104 = vunpack.c.h.b16 %v1638
  %v2105 = vunpack.c.l.b16 %v1639
  %v2106 = vunpack.c.h.b16 %v1639
  %v2107 = vunpack.c.l.b16 %v1640
  %v2108 = vunpack.c.h.b16 %v1640
  %v2109 = vunpack.c.l.b16 %v1641
  %v2110 = vunpack.c.h.b16 %v1641
  %v2111 = vunpack.c.l.b16 %v1642
  %v2112 = vunpack.c.h.b16 %v1642
  %v2113 = vunpack.c.l.b16 %v1643
  %v2114 = vunpack.c.h.b16 %v1643
  %v2115 = vunpack.c.l.b16 %v1644
  %v2116 = vunpack.c.h.b16 %v1644
  %v2117 = vpack.c.b16 %v2105, %v2101
  %v2118 = vpack.c.b16 %v2106, %v2102
  %v2119 = vpack.c.b16 %v2107, %v2103
  %v2120 = vpack.c.b16 %v2108, %v2104
  %v2121 = vpack.c.b16 %v2113, %v2109
  %v2122 = vpack.c.b16 %v2114, %v2110
  %v2123 = vpack.c.b16 %v2115, %v2111
  %v2124 = vpack.c.b16 %v2116, %v2112
  %v2141 = vunpack.c.l.b16 %v1709
  %v2142 = vunpack.c.h.b16 %v1709
  %v2143 = vunpack.c.l.b16 %v1710
  %v2144 = vunpack.c.h.b16 %v1710
  %v2145 = vunpack.c.l.b16 %v1711
  %v2146 = vunpack.c.h.b16 %v1711
  %v2147 = vunpack.c.l.b16 %v1712
  %v2148 = vunpack.c.h.b16 %v1712
  %v2149 = vunpack.c.l.b16 %v1713
  %v2150 = vunpack.c.h.b16 %v1713
  %v2151 = vunpack.c.l.b16 %v1714
  %v2152 = vunpack.c.h.b16 %v1714
  %v2153 = vunpack.c.l.b16 %v1715
  %v2154 = vunpack.c.h.b16 %v1715
  %v2155 = vunpack.c.l.b16 %v1716
  %v2156 = vunpack.c.h.b16 %v1716
  %v2157 = vpack.c.b16 %v2145, %v2141
  %v2158 = vpack.c.b16 %v2146, %v2142
  %v2159 = vpack.c.b16 %v2147, %v2143
  %v2160 = vpack.c.b16 %v2148, %v2144
  %v2161 = vpack.c.b16 %v2153, %v2149
  %v2162 = vpack.c.b16 %v2154, %v2150
  %v2163 = vpack.c.b16 %v2155, %v2151
  %v2164 = vpack.c.b16 %v2156, %v2152
  %v2181 = vunpack.c.l.b16 %v1717
  %v2182 = vunpack.c.h.b16 %v1717
  %v2183 = vunpack.c.l.b16 %v1718
  %v2184 = vunpack.c.h.b16 %v1718
  %v2185 = vunpack.c.l.b16 %v1719
  %v2186 = vunpack.c.h.b16 %v1719
  %v2187 = vunpack.c.l.b16 %v1720
  %v2188 = vunpack.c.h.b16 %v1720
  %v2189 = vunpack.c.l.b16 %v1721
  %v2190 = vunpack.c.h.b16 %v1721
  %v2191 = vunpack.c.l.b16 %v1722
  %v2192 = vunpack.c.h.b16 %v1722
  %v2193 = vunpack.c.l.b16 %v1723
  %v2194 = vunpack.c.h.b16 %v1723
  %v2195 = vunpack.c.l.b16 %v1724
  %v2196 = vunpack.c.h.b16 %v1724
  %v2197 = vpack.c.b16 %v2185, %v2181
  %v2198 = vpack.c.b16 %v2186, %v2182
  %v2199 = vpack.c.b16 %v2187, %v2183
  %v2200 = vpack.c.b16 %v2188, %v2184
  %v2201 = vpack.c.b16 %v2193, %v2189
  %v2202 = vpack.c.b16 %v2194, %v2190
  %v2203 = vpack.c.b16 %v2195, %v2191
  %v2204 = vpack.c.b16 %v2196, %v2192
  %v2221 = vunpack.c.l.b16 %v1789
  %v2222 = vunpack.c.h.b16 %v1789
  %v2223 = vunpack.c.l.b16 %v1790
  %v2224 = vunpack.c.h.b16 %v1790
  %v2225 = vunpack.c.l.b16 %v1791
  %v2226 = vunpack.c.h.b16 %v1791
  %v2227 = vunpack.c.l.b16 %v1792
  %v2228 = vunpack.c.h.b16 %v1792
  %v2229 = vunpack.c.l.b16 %v1793
  %v2230 = vunpack.c.h.b16 %v1793
  %v2231 = vunpack.c.l.b16 %v1794
  %v2232 = vunpack.c.h.b16 %v1794
  %v2233 = vunpack.c.l.b16 %v1795
  %v2234 = vunpack.c.h.b16 %v1795
  %v2235 = vunpack.c.l.b16 %v1796
  %v2236 = vunpack.c.h.b16 %v1796
  %v2237 = vpack.c.b16 %v2225, %v2221
  %v2238 = vpack.c.b16 %v2226, %v2222
  %v2239 = vpack.c.b16 %v2227, %v2223
  %v2240 = vpack.c.b16 %v2228, %v2224
  %v2241 = vpack.c.b16 %v2233, %v2229
  %v2242 = vpack.c.b16 %v2234, %v2230
  %v2243 = vpack.c.b16 %v2235, %v2231
  %v2244 = vpack.c.b16 %v2236, %v2232
  %v2261 = vunpack.c.l.b16 %v1861
  %v2262 = vunpack.c.h.b16 %v1861
  %v2263 = vunpack.c.l.b16 %v1862
  %v2264 = vunpack.c.h.b16 %v1862
  %v2265 = vunpack.c.l.b16 %v1863
  %v2266 = vunpack.c.h.b16 %v1863
  %v2267 = vunpack.c.l.b16 %v1864
  %v2268 = vunpack.c.h.b16 %v1864
  %v2269 = vunpack.c.l.b16 %v1865
  %v2270 = vunpack.c.h.b16 %v1865
  %v2271 = vunpack.c.l.b16 %v1866
  %v2272 = vunpack.c.h.b16 %v1866
  %v2273 = vunpack.c.l.b16 %v1867
  %v2274 = vunpack.c.h.b16 %v1867
  %v2275 = vunpack.c.l.b16 %v1868
  %v2276 = vunpack.c.h.b16 %v1868
  %v2277 = vpack.c.b16 %v2265, %v2261
  %v2278 = vpack.c.b16 %v2266, %v2262
  %v2279 = vpack.c.b16 %v2267, %v2263
  %v2280 = vpack.c.b16 %v2268, %v2264
  %v2281 = vpack.c.b16 %v2273, %v2269
  %v2282 = vpack.c.b16 %v2274, %v2270
  %v2283 = vpack.c.b16 %v2275, %v2271
  %v2284 = vpack.c.b16 %v2276, %v2272
  %v2301 = vunpack.c.l.b16 %v1933
  %v2302 = vunpack.c.h.b16 %v1933
  %v2303 = vunpack.c.l.b16 %v1934
  %v2304 = vunpack.c.h.b16 %v1934
  %v2305 = vunpack.c.l.b16 %v1935
  %v2306 = vunpack.c.h.b16 %v1935
  %v2307 = vunpack.c.l.b16 %v1936
  %v2308 = vunpack.c.h.b16 %v1936
  %v2309 = vunpack.c.l.b16 %v1937
  %v2310 = vunpack.c.h.b16 %v1937
  %v2311 = vunpack.c.l.b16 %v1938
  %v2312 = vunpack.c.h.b16 %v1938
  %v2313 = vunpack.c.l.b16 %v1939
  %v2314 = vunpack.c.h.b16 %v1939
  %v2315 = vunpack.c.l.b16 %v1940
  %v2316 = vunpack.c.h.b16 %v1940
  %v2317 = vpack.c.b16 %v2305, %v2301
  %v2318 = vpack.c.b16 %v2306, %v2302
  %v2319 = vpack.c.b16 %v2307, %v2303
  %v2320 = vpack.c.b16 %v2308, %v2304
  %v2321 = vpack.c.b16 %v2313, %v2309
  %v2322 = vpack.c.b16 %v2314, %v2310
  %v2323 = vpack.c.b16 %v2315, %v2311
  %v2324 = vpack.c.b16 %v2316, %v2312
  %v2341 = vunpack.c.l.b16 %v2005
  %v2342 = vunpack.c.h.b16 %v2005
  %v2343 = vunpack.c.l.b16 %v2006
  %v2344 = vunpack.c.h.b16 %v2006
  %v2345 = vunpack.c.l.b16 %v2007
  %v2346 = vunpack.c.h.b16 %v2007
  %v2347 = vunpack.c.l.b16 %v2008
  %v2348 = vunpack.c.h.b16 %v2008
  %v2349 = vunpack.c.l.b16 %v2009
  %v2350 = vunpack.c.h.b16 %v2009
  %v2351 = vunpack.c.l.b16 %v2010
  %v2352 = vunpack.c.h.b16 %v2010
  %v2353 = vunpack.c.l.b16 %v2011
  %v2354 = vunpack.c.h.b16 %v2011
  %v2355 = vunpack.c.l.b16 %v2012
  %v2356 = vunpack.c.h.b16 %v2012
  %v2357 = vpack.c.b16 %v2345, %v2341
  %v2358 = vpack.c.b16 %v2346, %v2342
  %v2359 = vpack.c.b16 %v2347, %v2343
  %v2360 = vpack.c.b16 %v2348, %v2344
  %v2361 = vpack.c.b16 %v2353, %v2349
  %v2362 = vpack.c.b16 %v2354, %v2350
  %v2363 = vpack.c.b16 %v2355, %v2351
  %v2364 = vpack.c.b16 %v2356, %v2352
  %v2373 = vld [vmem:[%s4] sm:$0xff]
  %v2374 = vld [vmem:[%s4 + $0x8] sm:$0xf]
  %v2375 = vld [vmem:[%s4 + $0xc] sm:$0xff]
  %v2376 = vld [vmem:[%s4 + $0x14] sm:$0xf]
  %v2377 = vld [vmem:[%s4 + $0x18] sm:$0xff]
  %v2378 = vld [vmem:[%s4 + $0x20] sm:$0xf]
  %v2379 = vld [vmem:[%s4 + $0x24] sm:$0xff]
  %v2380 = vld [vmem:[%s4 + $0x2c] sm:$0xf]
  %v2381 = vld [vmem:[%s5] sm:$0xff]
  %v2382 = vld [vmem:[%s5 + $0x8] sm:$0xff]
  %v2383 = vld [vmem:[%s5 + $0x10] sm:$0xff]
  %v2384 = vld [vmem:[%s5 + $0x18] sm:$0xff]
  %2386 = vset.pattern.permute.xlu0 0
  %2387 = vperm.xlu0 %2386, %v2381
  %v2388 = vpop.permute.xlu0 %2387
  %2391 = vset.pattern.permute.xlu0 0
  %2392 = vperm.xlu0 %2391, %v2382
  %v2393 = vpop.permute.xlu0 %2392
  %2396 = vset.pattern.permute.xlu0 0
  %2397 = vperm.xlu0 %2396, %v2383
  %v2398 = vpop.permute.xlu0 %2397
  %2401 = vset.pattern.permute.xlu0 0
  %2402 = vperm.xlu0 %2401, %v2384
  %v2403 = vpop.permute.xlu0 %2402
  %v2413 = vunpack.c.l.b16 %v2373
  %v2414 = vunpack.c.h.b16 %v2373
  %v2415 = vunpack.c.l.b16 %v2374
  %v2416 = vunpack.c.l.b16 %v2375
  %v2417 = vunpack.c.h.b16 %v2375
  %v2418 = vunpack.c.l.b16 %v2376
  %v2419 = vunpack.c.l.b16 %v2377
  %v2420 = vunpack.c.h.b16 %v2377
  %v2421 = vunpack.c.l.b16 %v2378
  %v2422 = vunpack.c.l.b16 %v2379
  %v2423 = vunpack.c.h.b16 %v2379
  %v2424 = vunpack.c.l.b16 %v2380
  %v2425 = vpack.c.b16 %v2416, %v2413
  %v2426 = vpack.c.b16 %v2417, %v2414
  %v2427 = vpack.c.b16 %v2418, %v2415
  %v2428 = vpack.c.b16 %v2422, %v2419
  %v2429 = vpack.c.b16 %v2423, %v2420
  %v2430 = vpack.c.b16 %v2424, %v2421
  %v2436 = vsel %vm1178, %v2427, 0
  %v2439 = vsel %vm1178, %v2430, 0
  %2441 = vmatpush.bf16.msra.mxu0 %v2161
  %2442 = vmatpush.bf16.msra.mxu0 %v2157
  %2443 = vmatpush.bf16.msra.mxu0 %v2121
  %2444 = vmatpush.bf16.msra.mxu0 %v2117
  %2445 = vmatpush.bf16.msra.mxu0 %v2081
  %2446 = vmatpush.bf16.msra.mxu0 %v2077
  %2447 = vmatpush.bf16.msra.mxu0 %v2041
  %2448 = vmatpush.bf16.msra.mxu0 %v2037
  %2449 = vmatmul.bf16.gmra.mxu0 %v2425
  %v2450 = vpop.f32.mrf.mxu0
  %v2451 = vadd.f32 %v2388, %v2450
  %v2452 = vpop.f32.mrf.mxu0
  %v2453 = vadd.f32 %v2393, %v2452
  %2454 = vmatmul.bf16.gmra.mxu0 %v2428
  %v2455 = vpop.f32.mrf.mxu0
  %v2456 = vadd.f32 %v2398, %v2455
  %v2457 = vpop.f32.mrf.mxu0
  %v2458 = vadd.f32 %v2403, %v2457
  %2459 = vdwg.mxu0
  %2460 = vmatpush.bf16.msra.mxu0 %v2321
  %2461 = vmatpush.bf16.msra.mxu0 %v2317
  %2462 = vmatpush.bf16.msra.mxu0 %v2281
  %2463 = vmatpush.bf16.msra.mxu0 %v2277
  %2464 = vmatpush.bf16.msra.mxu0 %v2241
  %2465 = vmatpush.bf16.msra.mxu0 %v2237
  %2466 = vmatpush.bf16.msra.mxu0 %v2201
  %2467 = vmatpush.bf16.msra.mxu0 %v2197
  %2468 = vmatmul.bf16.gmra.mxu0 %v2426
  %v2469 = vpop.f32.mrf.mxu0
  %v2470 = vadd.f32 %v2451, %v2469
  %v2471 = vpop.f32.mrf.mxu0
  %v2472 = vadd.f32 %v2453, %v2471
  %2473 = vmatmul.bf16.gmra.mxu0 %v2429
  %v2474 = vpop.f32.mrf.mxu0
  %v2475 = vadd.f32 %v2456, %v2474
  %v2476 = vpop.f32.mrf.mxu0
  %v2477 = vadd.f32 %v2458, %v2476
  %2478 = vdwg.mxu0
  %2479 = vmatpush.bf16.msra.mxu0 0
  %2480 = vmatpush.bf16.msra.mxu0 0
  %2481 = vmatpush.bf16.msra.mxu0 0
  %2482 = vmatpush.bf16.msra.mxu0 0
  %2483 = vmatpush.bf16.msra.mxu0 0
  %2484 = vmatpush.bf16.msra.mxu0 0
  %2485 = vmatpush.bf16.msra.mxu0 %v2361
  %2486 = vmatpush.bf16.msra.mxu0 %v2357
  %2487 = vmatmul.bf16.gmra.mxu0 %v2436
  %v2488 = vpop.f32.mrf.mxu0
  %v2489 = vadd.f32 %v2470, %v2488
  %v2490 = vpop.f32.mrf.mxu0
  %v2491 = vadd.f32 %v2472, %v2490
  %2492 = vmatmul.bf16.gmra.mxu0 %v2439
  %v2493 = vpop.f32.mrf.mxu0
  %v2494 = vadd.f32 %v2475, %v2493
  %v2495 = vpop.f32.mrf.mxu0
  %v2496 = vadd.f32 %v2477, %v2495
  %2497 = vdwg.mxu0
  %2498 = vmatpush.bf16.msra.mxu0 %v2162
  %2499 = vmatpush.bf16.msra.mxu0 %v2158
  %2500 = vmatpush.bf16.msra.mxu0 %v2122
  %2501 = vmatpush.bf16.msra.mxu0 %v2118
  %2502 = vmatpush.bf16.msra.mxu0 %v2082
  %2503 = vmatpush.bf16.msra.mxu0 %v2078
  %2504 = vmatpush.bf16.msra.mxu0 %v2042
  %2505 = vmatpush.bf16.msra.mxu0 %v2038
  %2506 = vmatmul.bf16.gmra.mxu0 %v2425
  %v2507 = vpop.f32.mrf.mxu0
  %v2508 = vadd.f32 %v2388, %v2507
  %v2509 = vpop.f32.mrf.mxu0
  %v2510 = vadd.f32 %v2393, %v2509
  %2511 = vmatmul.bf16.gmra.mxu0 %v2428
  %v2512 = vpop.f32.mrf.mxu0
  %v2513 = vadd.f32 %v2398, %v2512
  %v2514 = vpop.f32.mrf.mxu0
  %v2515 = vadd.f32 %v2403, %v2514
  %2516 = vdwg.mxu0
  %2517 = vmatpush.bf16.msra.mxu0 %v2322
  %2518 = vmatpush.bf16.msra.mxu0 %v2318
  %2519 = vmatpush.bf16.msra.mxu0 %v2282
  %2520 = vmatpush.bf16.msra.mxu0 %v2278
  %2521 = vmatpush.bf16.msra.mxu0 %v2242
  %2522 = vmatpush.bf16.msra.mxu0 %v2238
  %2523 = vmatpush.bf16.msra.mxu0 %v2202
  %2524 = vmatpush.bf16.msra.mxu0 %v2198
  %2525 = vmatmul.bf16.gmra.mxu0 %v2426
  %v2526 = vpop.f32.mrf.mxu0
  %v2527 = vadd.f32 %v2508, %v2526
  %v2528 = vpop.f32.mrf.mxu0
  %v2529 = vadd.f32 %v2510, %v2528
  %2530 = vmatmul.bf16.gmra.mxu0 %v2429
  %v2531 = vpop.f32.mrf.mxu0
  %v2532 = vadd.f32 %v2513, %v2531
  %v2533 = vpop.f32.mrf.mxu0
  %v2534 = vadd.f32 %v2515, %v2533
  %2535 = vdwg.mxu0
  %2536 = vmatpush.bf16.msra.mxu0 0
  %2537 = vmatpush.bf16.msra.mxu0 0
  %2538 = vmatpush.bf16.msra.mxu0 0
  %2539 = vmatpush.bf16.msra.mxu0 0
  %2540 = vmatpush.bf16.msra.mxu0 0
  %2541 = vmatpush.bf16.msra.mxu0 0
  %2542 = vmatpush.bf16.msra.mxu0 %v2362
  %2543 = vmatpush.bf16.msra.mxu0 %v2358
  %2544 = vmatmul.bf16.gmra.mxu0 %v2436
  %v2545 = vpop.f32.mrf.mxu0
  %v2546 = vadd.f32 %v2527, %v2545
  %v2547 = vpop.f32.mrf.mxu0
  %v2548 = vadd.f32 %v2529, %v2547
  %2549 = vmatmul.bf16.gmra.mxu0 %v2439
  %v2550 = vpop.f32.mrf.mxu0
  %v2551 = vadd.f32 %v2532, %v2550
  %v2552 = vpop.f32.mrf.mxu0
  %v2553 = vadd.f32 %v2534, %v2552
  %2554 = vdwg.mxu0
  %2555 = vmatpush.bf16.msra.mxu0 %v2163
  %2556 = vmatpush.bf16.msra.mxu0 %v2159
  %2557 = vmatpush.bf16.msra.mxu0 %v2123
  %2558 = vmatpush.bf16.msra.mxu0 %v2119
  %2559 = vmatpush.bf16.msra.mxu0 %v2083
  %2560 = vmatpush.bf16.msra.mxu0 %v2079
  %2561 = vmatpush.bf16.msra.mxu0 %v2043
  %2562 = vmatpush.bf16.msra.mxu0 %v2039
  %2563 = vmatmul.bf16.gmra.mxu0 %v2425
  %v2564 = vpop.f32.mrf.mxu0
  %v2565 = vadd.f32 %v2388, %v2564
  %v2566 = vpop.f32.mrf.mxu0
  %v2567 = vadd.f32 %v2393, %v2566
  %2568 = vmatmul.bf16.gmra.mxu0 %v2428
  %v2569 = vpop.f32.mrf.mxu0
  %v2570 = vadd.f32 %v2398, %v2569
  %v2571 = vpop.f32.mrf.mxu0
  %v2572 = vadd.f32 %v2403, %v2571
  %2573 = vdwg.mxu0
  %2574 = vmatpush.bf16.msra.mxu0 %v2323
  %2575 = vmatpush.bf16.msra.mxu0 %v2319
  %2576 = vmatpush.bf16.msra.mxu0 %v2283
  %2577 = vmatpush.bf16.msra.mxu0 %v2279
  %2578 = vmatpush.bf16.msra.mxu0 %v2243
  %2579 = vmatpush.bf16.msra.mxu0 %v2239
  %2580 = vmatpush.bf16.msra.mxu0 %v2203
  %2581 = vmatpush.bf16.msra.mxu0 %v2199
  %2582 = vmatmul.bf16.gmra.mxu0 %v2426
  %v2583 = vpop.f32.mrf.mxu0
  %v2584 = vadd.f32 %v2565, %v2583
  %v2585 = vpop.f32.mrf.mxu0
  %v2586 = vadd.f32 %v2567, %v2585
  %2587 = vmatmul.bf16.gmra.mxu0 %v2429
  %v2588 = vpop.f32.mrf.mxu0
  %v2589 = vadd.f32 %v2570, %v2588
  %v2590 = vpop.f32.mrf.mxu0
  %v2591 = vadd.f32 %v2572, %v2590
  %2592 = vdwg.mxu0
  %2593 = vmatpush.bf16.msra.mxu0 0
  %2594 = vmatpush.bf16.msra.mxu0 0
  %2595 = vmatpush.bf16.msra.mxu0 0
  %2596 = vmatpush.bf16.msra.mxu0 0
  %2597 = vmatpush.bf16.msra.mxu0 0
  %2598 = vmatpush.bf16.msra.mxu0 0
  %2599 = vmatpush.bf16.msra.mxu0 %v2363
  %2600 = vmatpush.bf16.msra.mxu0 %v2359
  %2601 = vmatmul.bf16.gmra.mxu0 %v2436
  %v2602 = vpop.f32.mrf.mxu0
  %v2603 = vadd.f32 %v2584, %v2602
  %v2604 = vpop.f32.mrf.mxu0
  %v2605 = vadd.f32 %v2586, %v2604
  %2606 = vmatmul.bf16.gmra.mxu0 %v2439
  %v2607 = vpop.f32.mrf.mxu0
  %v2608 = vadd.f32 %v2589, %v2607
  %v2609 = vpop.f32.mrf.mxu0
  %v2610 = vadd.f32 %v2591, %v2609
  %2611 = vdwg.mxu0
  %2612 = vmatpush.bf16.msra.mxu0 %v2164
  %2613 = vmatpush.bf16.msra.mxu0 %v2160
  %2614 = vmatpush.bf16.msra.mxu0 %v2124
  %2615 = vmatpush.bf16.msra.mxu0 %v2120
  %2616 = vmatpush.bf16.msra.mxu0 %v2084
  %2617 = vmatpush.bf16.msra.mxu0 %v2080
  %2618 = vmatpush.bf16.msra.mxu0 %v2044
  %2619 = vmatpush.bf16.msra.mxu0 %v2040
  %2620 = vmatmul.bf16.gmra.mxu0 %v2425
  %v2621 = vpop.f32.mrf.mxu0
  %v2622 = vadd.f32 %v2388, %v2621
  %v2623 = vpop.f32.mrf.mxu0
  %v2624 = vadd.f32 %v2393, %v2623
  %2625 = vmatmul.bf16.gmra.mxu0 %v2428
  %v2626 = vpop.f32.mrf.mxu0
  %v2627 = vadd.f32 %v2398, %v2626
  %v2628 = vpop.f32.mrf.mxu0
  %v2629 = vadd.f32 %v2403, %v2628
  %2630 = vdwg.mxu0
  %2631 = vmatpush.bf16.msra.mxu0 %v2324
  %2632 = vmatpush.bf16.msra.mxu0 %v2320
  %2633 = vmatpush.bf16.msra.mxu0 %v2284
  %2634 = vmatpush.bf16.msra.mxu0 %v2280
  %2635 = vmatpush.bf16.msra.mxu0 %v2244
  %2636 = vmatpush.bf16.msra.mxu0 %v2240
  %2637 = vmatpush.bf16.msra.mxu0 %v2204
  %2638 = vmatpush.bf16.msra.mxu0 %v2200
  %2639 = vmatmul.bf16.gmra.mxu0 %v2426
  %v2640 = vpop.f32.mrf.mxu0
  %v2641 = vadd.f32 %v2622, %v2640
  %v2642 = vpop.f32.mrf.mxu0
  %v2643 = vadd.f32 %v2624, %v2642
  %2644 = vmatmul.bf16.gmra.mxu0 %v2429
  %v2645 = vpop.f32.mrf.mxu0
  %v2646 = vadd.f32 %v2627, %v2645
  %v2647 = vpop.f32.mrf.mxu0
  %v2648 = vadd.f32 %v2629, %v2647
  %2649 = vdwg.mxu0
  %2650 = vmatpush.bf16.msra.mxu0 0
  %2651 = vmatpush.bf16.msra.mxu0 0
  %2652 = vmatpush.bf16.msra.mxu0 0
  %2653 = vmatpush.bf16.msra.mxu0 0
  %2654 = vmatpush.bf16.msra.mxu0 0
  %2655 = vmatpush.bf16.msra.mxu0 0
  %2656 = vmatpush.bf16.msra.mxu0 %v2364
  %2657 = vmatpush.bf16.msra.mxu0 %v2360
  %2658 = vmatmul.bf16.gmra.mxu0 %v2436
  %v2659 = vpop.f32.mrf.mxu0
  %v2660 = vadd.f32 %v2641, %v2659
  %v2661 = vpop.f32.mrf.mxu0
  %v2662 = vadd.f32 %v2643, %v2661
  %2663 = vmatmul.bf16.gmra.mxu0 %v2439
  %v2664 = vpop.f32.mrf.mxu0
  %v2665 = vadd.f32 %v2646, %v2664
  %v2666 = vpop.f32.mrf.mxu0
  %v2667 = vadd.f32 %v2648, %v2666
  %2668 = vdwg.mxu0
  %v2669 = vmax.f32 %v2489, 0.0
  %v2670 = vmax.f32 %v2546, 0.0
  %v2671 = vmax.f32 %v2603, 0.0
  %v2672 = vmax.f32 %v2660, 0.0
  %v2673 = vmax.f32 %v2491, 0.0
  %v2674 = vmax.f32 %v2548, 0.0
  %v2675 = vmax.f32 %v2605, 0.0
  %v2676 = vmax.f32 %v2662, 0.0
  %v2677 = vmax.f32 %v2494, 0.0
  %v2678 = vmax.f32 %v2551, 0.0
  %v2679 = vmax.f32 %v2608, 0.0
  %v2680 = vmax.f32 %v2665, 0.0
  %v2681 = vmax.f32 %v2496, 0.0
  %v2682 = vmax.f32 %v2553, 0.0
  %v2683 = vmax.f32 %v2610, 0.0
  %v2684 = vmax.f32 %v2667, 0.0
  %2685 = vst [vmem:[%s7] sm:$0xff] %v2669
  %2686 = vst [vmem:[%s7 + $0x8] sm:$0xff] %v2670
  %2687 = vst [vmem:[%s7 + $0x10] sm:$0xff] %v2671
  %2688 = vst [vmem:[%s7 + $0x18] sm:$0xff] %v2672
  %2689 = vst [vmem:[%s7 + $0x20] sm:$0xff] %v2673
  %2690 = vst [vmem:[%s7 + $0x28] sm:$0xff] %v2674
  %2691 = vst [vmem:[%s7 + $0x30] sm:$0xff] %v2675
  %2692 = vst [vmem:[%s7 + $0x38] sm:$0xff] %v2676
  %2693 = vst [vmem:[%s7 + $0x40] sm:$0xff] %v2677
  %2694 = vst [vmem:[%s7 + $0x48] sm:$0xff] %v2678
  %2695 = vst [vmem:[%s7 + $0x50] sm:$0xff] %v2679
  %2696 = vst [vmem:[%s7 + $0x58] sm:$0xff] %v2680
  %2697 = vst [vmem:[%s7 + $0x60] sm:$0xff] %v2681
  %2698 = vst [vmem:[%s7 + $0x68] sm:$0xff] %v2682
  %2699 = vst [vmem:[%s7 + $0x70] sm:$0xff] %v2683
  %2700 = vst [vmem:[%s7 + $0x78] sm:$0xff] %v2684
  // Predicated region
  $region30: #{ffm_forward.1} parent=0 // pred_check
    _
  $region31: #{ffm_forward.1} parent=0 // pred_check_branch
    %2702 = sbr.rel (0) target = $region33
  $region32: #{ffm_forward.1} parent=0 // pred_region
    _
  $region33: #{ffm_forward.1} parent=0 // pred_fallthru
    _
  // Predicated region
  $region34: #{ffm_forward.1} parent=0 // pred_check
    _
  $region35: #{ffm_forward.1} parent=0 // pred_check_branch
    %2704 = sbr.rel (0) target = $region37
  $region36: #{ffm_forward.1} parent=0 // pred_region
    _
  $region37: #{ffm_forward.1} parent=0 // pred_fallthru
    _

</llo_original>
